<compile_context>
chip_gen: v5e
topology: v5e:2x2
jax: 0.10.0
libtpu: 0.0.40
codegen_flags: <defaults>
</compile_context>

<pallas_src>
import functools

import numpy as np
import jax
import jax.numpy as jnp
from jax.experimental import pallas as pl
from jax.experimental.pallas import tpu as pltpu

_VMEM_LIMIT = 64 * 1024 * 1024   # raise toward 96MB on v5e/v6e, keep <=48MB on v7x if tiles grow
_ROW_CHUNK = 512                 # flat rows per VPU accumulation chunk (multiple of 8)


# ----------------------------------------------------------------------------
# BlockSpec helpers
# ----------------------------------------------------------------------------
def _const_spec(arr):
    zeros = (0,) * arr.ndim
    return pl.BlockSpec(arr.shape, lambda b: zeros)


def _image_spec(arr):
    tail = (0,) * (arr.ndim - 1)
    return pl.BlockSpec((1,) + arr.shape[1:], lambda b: (b,) + tail)


# ----------------------------------------------------------------------------
# Kernel 1: 1x1 conv + folded BN + ReLU  (bf16 MXU matmul, f32 accumulation)
# ----------------------------------------------------------------------------
def _mm_bias_relu_kernel(x_ref, w_ref, b_ref, o_ref):
    y = jnp.dot(x_ref[...], w_ref[...], preferred_element_type=jnp.float32)
    o_ref[...] = jnp.maximum(y + b_ref[...], 0.0).astype(o_ref.dtype)


def _pick_tm(n):
    # Prefer a row tile that divides n with >=2 grid steps (pipeline overlap / megacore);
    # otherwise fall back to a fixed tile with a masked ragged tail (cdiv grid).
    for tm in (512, 256, 128, 64, 32, 16, 8):
        if n % tm == 0 and n // tm >= 2:
            return tm
    if n <= 512:
        return n
    return 256


def matmul_bias_relu(x, w, b, out_dtype):
    N, K = x.shape
    C = w.shape[1]
    tm = _pick_tm(N)
    return pl.pallas_call(
        _mm_bias_relu_kernel,
        out_shape=jax.ShapeDtypeStruct((N, C), out_dtype),
        grid=(pl.cdiv(N, tm),),
        in_specs=[pl.BlockSpec((tm, K), lambda i: (i, 0)),
                  pl.BlockSpec((K, C), lambda i: (0, 0)),
                  pl.BlockSpec((1, C), lambda i: (0, 0))],
        out_specs=pl.BlockSpec((tm, C), lambda i: (i, 0)),
        compiler_params=pltpu.CompilerParams(
            dimension_semantics=("parallel",), vmem_limit_bytes=_VMEM_LIMIT),
    )(x, w, b)


# ----------------------------------------------------------------------------
# Kernel 2: fused  conv2(3x3 grouped, +BN+ReLU)
#                  [+ reshape branch (grouped 3x3 + BN + ReLU -> 1x1 + BN + ReLU)]
#                  -> conv3(1x1, +BN) -> + shortcut -> ReLU
# All operands are 2D "flat padded-row" slabs; taps are contiguous row-range slices.
# ----------------------------------------------------------------------------
def _make_fused_kernel(*, Mz, starts, depthwise, NC, CW, r_starts, has_scw, RC=_ROW_CHUNK):
    has_reshape = r_starts is not None

    def kernel(*refs):
        it = iter(refs)
        xph_ref = next(it)                           # (1, Rtot, Cmid)     bf16
        w2_ref = next(it)                            # (9, Cmid) f32 | (9, NC, CW, CW) bf16
        b2_ref = next(it)                            # (1, Cmid)           f32
        if has_reshape:
            xv_ref = next(it)                        # (1, Rv, 4*Cmid)     bf16
            wt_ref = next(it)                        # (9, 4*Cmid)         f32
            ssum_ref = next(it)                      # (4*Cmid, Cmid)      f32
            br1_ref = next(it)                       # (1, Cmid)           f32
            wr2_ref = next(it)                       # (Cmid, Cmid)        bf16
            br2_ref = next(it)                       # (1, Cmid)           f32
        w3_ref = next(it)                            # (Cmid, Cout)        bf16
        b3_ref = next(it)                            # (1, Cout)           f32
        xsc_ref = next(it)                           # (1, Mz, Cin|Cout)   bf16
        if has_scw:
            wsc_ref = next(it)                       # (Cin, Cout)         bf16
            bsc_ref = next(it)                       # (1, Cout)           f32
        o_ref = next(it)                             # (1, Mz, Cout)       bf16
        z_ref = next(it)                             # VMEM (Mz, Cmid)     f32

        cmid = z_ref.shape[1]

        # ---- conv2: grouped 3x3 (+ folded BN + ReLU) ----
        if depthwise:
            # 9 unrolled VPU FMAs per row chunk; f32 accumulation; aligned chunk stores.
            for c0 in range(0, Mz, RC):
                rows = min(RC, Mz - c0)
                acc = jnp.zeros((rows, cmid), jnp.float32)
                for t in range(9):
                    s = starts[t] + c0
                    acc = acc + (xph_ref[0, s:s + rows, :].astype(jnp.float32)
                                 * w2_ref[t:t + 1, :])
                z_ref[c0:c0 + rows, :] = jnp.maximum(acc + b2_ref[...], 0.0)
        else:
            # 9 full-height MXU matmuls per diagonal weight chunk (block-diag grouped conv).
            for c in range(NC):
                col = c * CW
                acc = jnp.zeros((Mz, CW), jnp.float32)
                for t in range(9):
                    s = starts[t]
                    acc = acc + jnp.dot(xph_ref[0, s:s + Mz, col:col + CW],
                                        w2_ref[t, c],
                                        preferred_element_type=jnp.float32)
                z_ref[:, col:col + CW] = jnp.maximum(acc + b2_ref[:, col:col + CW], 0.0)

        # ---- reshape branch (stride==2): fused, residual added straight into z ----
        if has_reshape:
            cin_r = wt_ref.shape[1]
            for c0 in range(0, Mz, RC):
                rows = min(RC, Mz - c0)
                a = jnp.zeros((rows, cin_r), jnp.float32)
                for t in range(9):
                    s = r_starts[t] + c0
                    a = a + (xv_ref[0, s:s + rows, :].astype(jnp.float32)
                             * wt_ref[t:t + 1, :])
                # group-sum (4 input channels per group) + folded-BN bias + ReLU
                z1 = jnp.maximum(
                    jnp.dot(a, ssum_ref[...], preferred_element_type=jnp.float32)
                    + br1_ref[...], 0.0)
                # 1x1 conv + folded BN + ReLU
                resc = jnp.maximum(
                    jnp.dot(z1.astype(wr2_ref.dtype), wr2_ref[...],
                            preferred_element_type=jnp.float32) + br2_ref[...], 0.0)
                z_ref[c0:c0 + rows, :] = z_ref[c0:c0 + rows, :] + resc

        # ---- conv3 (1x1 + folded BN) -> + shortcut -> ReLU ----
        y = jnp.dot(z_ref[...].astype(w3_ref.dtype), w3_ref[...],
                    preferred_element_type=jnp.float32) + b3_ref[...]
        if has_scw:
            sc = jnp.dot(xsc_ref[0], wsc_ref[...],
                         preferred_element_type=jnp.float32) + bsc_ref[...]
        else:
            sc = xsc_ref[0].astype(jnp.float32)
        o_ref[0] = jnp.maximum(y + sc, 0.0).astype(o_ref.dtype)

    return kernel


def fused_conv2_conv3_shortcut(xph, w2, b2, rb, w3, b3, xsc, wsc, bsc, *,
                               Mz, starts, depthwise, NC, CW, r_starts):
    B = xph.shape[0]
    cmid = w3.shape[0]
    Cout = w3.shape[1]

    in_specs = [_image_spec(xph), _const_spec(w2), _const_spec(b2)]
    args = [xph, w2, b2]
    if rb is not None:
        xv, wt, ssum, br1, wr2, br2 = rb
        in_specs += [_image_spec(xv), _const_spec(wt), _const_spec(ssum),
                     _const_spec(br1), _const_spec(wr2), _const_spec(br2)]
        args += [xv, wt, ssum, br1, wr2, br2]
    in_specs += [_const_spec(w3), _const_spec(b3), _image_spec(xsc)]
    args += [w3, b3, xsc]
    if wsc is not None:
        in_specs += [_const_spec(wsc), _const_spec(bsc)]
        args += [wsc, bsc]

    kernel = _make_fused_kernel(
        Mz=Mz, starts=tuple(starts), depthwise=depthwise, NC=NC, CW=CW,
        r_starts=None if r_starts is None else tuple(r_starts),
        has_scw=wsc is not None)

    return pl.pallas_call(
        kernel,
        out_shape=jax.ShapeDtypeStruct((B, Mz, Cout), jnp.bfloat16),
        grid=(B,),
        in_specs=in_specs,
        out_specs=pl.BlockSpec((1, Mz, Cout), lambda b: (b, 0, 0)),
        scratch_shapes=[pltpu.VMEM((Mz, cmid), jnp.float32)],
        compiler_params=pltpu.CompilerParams(
            dimension_semantics=("parallel",), vmem_limit_bytes=_VMEM_LIMIT),
    )(*args)


# ----------------------------------------------------------------------------
# Parameters (inference-mode BN folded to affine)
# ----------------------------------------------------------------------------
def bn_fold(gamma, beta, mean, var, eps=1e-5):
    scale = gamma / jnp.sqrt(var + eps)
    bias = beta - mean * scale
    return scale, bias


def kaiming(key, shape):
    fan_out = shape[0] * shape[2] * shape[3]
    return jnp.sqrt(2.0 / fan_out) * jax.random.normal(key, shape, dtype=jnp.float32)


def init_params(key, in_channels, out_channels):
    cmid = out_channels // 2
    assert cmid % 32 == 0, "conv2 uses groups=32"
    ks = jax.random.split(key, 7)
    p = {}
    p['w1'] = kaiming(ks[0], (cmid, in_channels, 1, 1))
    p['w2'] = kaiming(ks[1], (cmid, cmid // 32, 3, 3))
    p['w3'] = kaiming(ks[2], (out_channels, cmid, 1, 1))
    p['wr1'] = kaiming(ks[3], (cmid, (out_channels * 2) // cmid, 3, 3))
    p['wr2'] = kaiming(ks[4], (cmid, cmid, 1, 1))
    p['ws'] = kaiming(ks[5], (out_channels, in_channels, 1, 1))
    bound = float(1.0 / np.sqrt(in_channels))
    p['bs_conv'] = jax.random.uniform(ks[6], (out_channels,), minval=-bound,
                                      maxval=bound, dtype=jnp.float32)
    for name, c in [('1', cmid), ('2', cmid), ('3', out_channels),
                    ('r1', cmid), ('r2', cmid), ('s', out_channels)]:
        s, b = bn_fold(jnp.ones(c), jnp.zeros(c), jnp.zeros(c), jnp.ones(c))
        p['s' + name] = s
        p['b' + name] = b
    return p


# ----------------------------------------------------------------------------
# Block forward pass built from the Pallas kernels
# ----------------------------------------------------------------------------
@functools.partial(jax.jit, static_argnames=("stride", "is_shortcut"))
def block_forward(x, p, stride, is_shortcut):
    B, Cin, H, W = x.shape
    cmid = p['w1'].shape[0]
    Cout = p['w3'].shape[0]
    Ho, Wo = H // stride, W // stride
    Wpitch = Wo + 2                 # common flat row pitch for z / res / shortcut / output
    Mz = Ho * Wpitch
    bf16 = jnp.bfloat16
    f32 = jnp.float32

    # ---- fold BN scales into weights (trace-time) ----
    w1f = (p['w1'][:, :, 0, 0].T * p['s1']).astype(bf16)
    b1 = p['b1'].reshape(1, cmid).astype(f32)
    w3f = (p['w3'][:, :, 0, 0].T * p['s3']).astype(bf16)
    b3 = p['b3'].reshape(1, Cout).astype(f32)
    b2 = p['b2'].reshape(1, cmid).astype(f32)

    gin = cmid // 32                # input channels per group of conv2
    if gin == 1:                    # depthwise: per-channel tap weights (VPU path)
        w2f = (p['w2'][:, 0].reshape(cmid, 9).T * p['s2']).astype(f32)      # (9, cmid)
        depthwise, NC, CW = True, 1, cmid
    else:                           # general grouped: block-diagonal dense per tap (MXU path)
        w2m = p['w2'] * p['s2'][:, None, None, None]                        # (cmid, gin, 3, 3)
        blocks = w2m.reshape(32, gin, gin, 9).transpose(3, 0, 2, 1)         # (9, g, j, u)
        eye32 = jnp.eye(32, dtype=w2m.dtype)
        w2full = (blocks[:, :, :, None, :] * eye32[None, :, None, :, None]
                  ).reshape(9, cmid, cmid)
        NC = 1                      # chunk the block-diagonal to <=256-wide diagonal blocks
        while cmid // (NC * 2) >= 256 and 32 % (NC * 2) == 0:
            NC *= 2
        CW = cmid // NC
        w2f = jnp.stack([w2full[:, c * CW:(c + 1) * CW, c * CW:(c + 1) * CW]
                         for c in range(NC)], axis=1).astype(bf16)          # (9, NC, CW, CW)
        depthwise = False

    # ---- layout: one NCHW -> NHWC transpose at entry ----
    x_nhwc = jnp.transpose(x, (0, 2, 3, 1))

    # ---- conv1: 1x1 + BN + ReLU (bf16 MXU, f32 accumulation, bf16 activation output) ----
    y1 = matmul_bias_relu(x_nhwc.reshape(B * H * W, Cin).astype(bf16), w1f, b1,
                          out_dtype=bf16)
    y1_nhwc = y1.reshape(B, H, W, cmid)

    # ---- conv2 input: flat padded slab(s), row pitch = Wpitch, phase-decomposed for stride 2
    #      so every in-kernel tap is one contiguous (Mz, cmid) slice ----
    if stride == 1:
        Hp_pad = Ho + 3
        xflat = jnp.pad(y1_nhwc, ((0, 0), (1, Hp_pad - H - 1), (1, Wpitch - W - 1), (0, 0)))
        xflat = xflat.reshape(B, Hp_pad * Wpitch, cmid)
        starts = [kh * Wpitch + kw for kh in range(3) for kw in range(3)]
    else:
        Hp_pad = Ho + 2
        y1p = jnp.pad(y1_nhwc, ((0, 0), (1, 1), (1, 1), (0, 0)))
        phs = []
        for ph in (0, 1):
            for pw in (0, 1):
                q = y1p[:, ph::2, pw::2, :]                        # (B, Ho+1, Wo+1, cmid)
                q = jnp.pad(q, ((0, 0), (0, Hp_pad - (Ho + 1)),
                                (0, Wpitch - (Wo + 1)), (0, 0)))
                phs.append(q)
        xflat = jnp.concatenate(phs, axis=1).reshape(B, 4 * Hp_pad * Wpitch, cmid)
        starts = [((kh % 2) * 2 + (kw % 2)) * Hp_pad * Wpitch
                  + (kh // 2) * Wpitch + (kw // 2)
                  for kh in range(3) for kw in range(3)]

    # ---- reshape branch inputs (stride == 2 only; fused into the main kernel) ----
    rb = None
    r_starts = None
    if stride == 2:
        Hv_pad = Ho + 3
        # torch `.view(B, -1, H//2, W//2)` on contiguous NCHW == row-major reshape in NCHW
        xv_nhwc = jnp.transpose(
            jnp.transpose(y1_nhwc, (0, 3, 1, 2)).reshape(B, 4 * cmid, Ho, Wo), (0, 2, 3, 1))
        xvp = jnp.pad(xv_nhwc, ((0, 0), (1, Hv_pad - Ho - 1), (1, Wpitch - Wo - 1), (0, 0)))
        xvflat = xvp.reshape(B, Hv_pad * Wpitch, 4 * cmid)
        wt = (p['wr1'] * p['sr1'][:, None, None, None]).reshape(4 * cmid, 9).T.astype(f32)
        ssum = jnp.repeat(jnp.eye(cmid, dtype=f32), 4, axis=0)               # (4*cmid, cmid)
        br1 = p['br1'].reshape(1, cmid).astype(f32)
        wr2f = (p['wr2'][:, :, 0, 0].T * p['sr2']).astype(bf16)
        br2 = p['br2'].reshape(1, cmid).astype(f32)
        rb = (xvflat, wt, ssum, br1, wr2f, br2)
        r_starts = [kh * Wpitch + kw for kh in range(3) for kw in range(3)]

    # ---- shortcut operand (same flat pitch layout, bf16) ----
    if is_shortcut:
        xs = x_nhwc[:, ::stride, ::stride, :]
        wsc = (p['ws'][:, :, 0, 0].T * p['ss']).astype(bf16)
        bsc = (p['ss'] * p['bs_conv'] + p['bs']).reshape(1, Cout).astype(f32)
    else:
        xs = x_nhwc                                   # identity (Cin==Cout, stride==1)
        wsc = None
        bsc = None
    xsc = jnp.pad(xs, ((0, 0), (0, 0), (0, Wpitch - Wo), (0, 0))
                  ).reshape(B, Mz, xs.shape[3]).astype(bf16)

    # ---- fused conv2 (+res) -> conv3 -> +shortcut -> ReLU  (bf16 output) ----
    out = fused_conv2_conv3_shortcut(
        xflat, w2f, b2, rb, w3f, b3, xsc, wsc, bsc,
        Mz=Mz, starts=starts, depthwise=depthwise, NC=NC, CW=CW, r_starts=r_starts)

    out = out.reshape(B, Ho, Wpitch, Cout)[:, :, :Wo, :]          # drop pitch-padding columns
    return jnp.transpose(out, (0, 3, 1, 2)).astype(f32)


# ----------------------------------------------------------------------------
# Pure-JAX reference (mirrors the PyTorch forward, inference-mode BN)
# ----------------------------------------------------------------------------
def conv2d_ref(x, w, stride=1, padding=0, groups=1, bias=None):
    out = jax.lax.conv_general_dilated(
        x, w, window_strides=(stride, stride),
        padding=[(padding, padding), (padding, padding)],
        dimension_numbers=('NCHW', 'OIHW', 'NCHW'),
        feature_group_count=groups,
        precision=jax.lax.Precision.HIGHEST)
    if bias is not None:
        out = out + bias[None, :, None, None]
    return out


def bn_ref(x, scale, bias):
    return x * scale[None, :, None, None] + bias[None, :, None, None]


def block_forward_ref(x, p, stride, is_shortcut):
    y = jax.nn.relu(bn_ref(conv2d_ref(x, p['w1']), p['s1'], p['b1']))
    if stride == 2:
        B, C, H, W = y.shape
        x_ = y.reshape(B, -1, H // 2, W // 2)
        out = jax.nn.relu(bn_ref(conv2d_ref(x_, p['wr1'], padding=1,
                                            groups=p['wr1'].shape[0]), p['sr1'], p['br1']))
        out = jax.nn.relu(bn_ref(conv2d_ref(out, p['wr2']), p['sr2'], p['br2']))
        y = jax.nn.relu(bn_ref(conv2d_ref(y, p['w2'], stride=stride, padding=1, groups=32),
                               p['s2'], p['b2']))
        y = y + out
    else:
        y = jax.nn.relu(bn_ref(conv2d_ref(y, p['w2'], stride=stride, padding=1, groups=32),
                               p['s2'], p['b2']))
    y = bn_ref(conv2d_ref(y, p['w3']), p['s3'], p['b3'])
    if is_shortcut:
        sc = bn_ref(conv2d_ref(x, p['ws'], stride=stride, bias=p['bs_conv']), p['ss'], p['bs'])
    else:
        sc = x
    return jax.nn.relu(y + sc)


# ----------------------------------------------------------------------------
if __name__ == "__main__":
    key = jax.random.PRNGKey(0)
    kx, kp1, kp2 = jax.random.split(key, 3)

    B, Cin, H, W = 2, 64, 8, 8
    x = jax.random.normal(kx, (B, Cin, H, W), dtype=jnp.float32)

    # Tolerances sized for bf16 MXU inputs / bf16 activations with f32 accumulation
    # vs an all-f32 reference.
    RTOL, ATOL = 2e-2, 3e-2

    # Case 1: downsampling block (stride=2, projection shortcut), Cout=64 -> cmid=32
    #         (depthwise conv2 path + fused reshape branch).
    params64 = init_params(kp1, Cin, 64)
    out1 = block_forward(x, params64, stride=2, is_shortcut=True)
    jax.block_until_ready(out1)
    ref1 = block_forward_ref(x, params64, stride=2, is_shortcut=True)
    np.testing.assert_allclose(np.asarray(out1), np.asarray(ref1), rtol=RTOL, atol=ATOL)

    # Case 2: identity block (stride=1, no shortcut conv), Cout=64.
    out2 = block_forward(x, params64, stride=1, is_shortcut=False)
    jax.block_until_ready(out2)
    ref2 = block_forward_ref(x, params64, stride=1, is_shortcut=False)
    np.testing.assert_allclose(np.asarray(out2), np.asarray(ref2), rtol=RTOL, atol=ATOL)

    # Case 3: downsampling block with Cout=128 -> cmid=64 (non-depthwise grouped conv2:
    #         exercises the full-height MXU tap-slab matmul path).
    params128 = init_params(kp2, Cin, 128)
    out3 = block_forward(x, params128, stride=2, is_shortcut=True)
    jax.block_until_ready(out3)
    ref3 = block_forward_ref(x, params128, stride=2, is_shortcut=True)
    np.testing.assert_allclose(np.asarray(out3), np.asarray(ref3), rtol=RTOL, atol=ATOL)

    print("KERNEL_OK")
</pallas_src>

<mosaic_0001>
module attributes {stable_mosaic.version = 11 : i64} {
  func.func @_mm_bias_relu_kernel(%arg0: i32, %arg1: memref<64x64xbf16, #tpu.memory_space<vmem>>, %arg2: memref<64x32xbf16, #tpu.memory_space<vmem>>, %arg3: memref<1x32xf32, #tpu.memory_space<vmem>>, %arg4: memref<64x32xbf16, #tpu.memory_space<vmem>>) attributes {dimension_semantics = [#tpu.dimension_semantics<parallel>], iteration_bounds = array<i64: 2>, scalar_prefetch = 0 : i64, scratch_operands = 0 : i64, tpu.core_type = #tpu.core_type<tc>, window_params = [{transform_indices = @transform_0, window_bounds = array<i64: 64, 64>}, {pipeline_mode = #tpu.pipeline_mode<synchronous>, transform_indices = @transform_1, window_bounds = array<i64: 64, 32>}, {pipeline_mode = #tpu.pipeline_mode<synchronous>, transform_indices = @transform_2, window_bounds = array<i64: 1, 32>}, {transform_indices = @transform_3, window_bounds = array<i64: 64, 32>}]} {
    %c0 = arith.constant 0 : index
    %c0_0 = arith.constant 0 : index
    %0 = vector.load %arg1[%c0, %c0_0] : memref<64x64xbf16, #tpu.memory_space<vmem>>, vector<64x64xbf16>
    %c0_1 = arith.constant 0 : index
    %c0_2 = arith.constant 0 : index
    %1 = vector.load %arg2[%c0_1, %c0_2] : memref<64x32xbf16, #tpu.memory_space<vmem>>, vector<64x32xbf16>
    %cst = arith.constant dense<0.000000e+00> : vector<64x32xf32>
    %2 = tpu.matmul %0, %1, %cst {dimension_numbers = #tpu.dot_dimension_numbers<[1], [0], [0], [1], [0, 0, 1, 1], [], []>} : vector<64x64xbf16>, vector<64x32xbf16>, vector<64x32xf32> -> vector<64x32xf32>
    %c0_3 = arith.constant 0 : index
    %c0_4 = arith.constant 0 : index
    %3 = vector.load %arg3[%c0_3, %c0_4] : memref<1x32xf32, #tpu.memory_space<vmem>>, vector<1x32xf32>
    %4 = vector.broadcast %3 : vector<1x32xf32> to vector<64x32xf32>
    %5 = arith.addf %2, %4 : vector<64x32xf32>
    %cst_5 = arith.constant 0.000000e+00 : f32
    %6 = vector.broadcast %cst_5 : f32 to vector<64x32xf32>
    %7 = arith.maximumf %5, %6 : vector<64x32xf32>
    %8 = arith.truncf %7 : vector<64x32xf32> to vector<64x32xbf16>
    %c0_6 = arith.constant 0 : index
    %c0_7 = arith.constant 0 : index
    %9 = vector.load %arg4[%c0_6, %c0_7] : memref<64x32xbf16, #tpu.memory_space<vmem>>, vector<64x32xbf16>
    tpu.vector_store %arg4[%c0_6, %c0_7], %8 {strides = array<i32>} : memref<64x32xbf16, #tpu.memory_space<vmem>>, vector<64x32xbf16>,
    return
  }
  func.func @transform_0(%arg0: i32) -> (i32, i32) {
    %c0_i32 = arith.constant 0 : i32
    %c0_i32_0 = arith.constant 0 : i32
    return %arg0, %c0_i32 : i32, i32
  }
  func.func @transform_1(%arg0: i32) -> (i32, i32) {
    %c0_i32 = arith.constant 0 : i32
    %c0_i32_0 = arith.constant 0 : i32
    %c0_i32_1 = arith.constant 0 : i32
    return %c0_i32, %c0_i32_0 : i32, i32
  }
  func.func @transform_2(%arg0: i32) -> (i32, i32) {
    %c0_i32 = arith.constant 0 : i32
    %c0_i32_0 = arith.constant 0 : i32
    %c0_i32_1 = arith.constant 0 : i32
    return %c0_i32, %c0_i32_0 : i32, i32
  }
  func.func @transform_3(%arg0: i32) -> (i32, i32) {
    %c0_i32 = arith.constant 0 : i32
    %c0_i32_0 = arith.constant 0 : i32
    return %arg0, %c0_i32 : i32, i32
  }
}

module attributes {stable_mosaic.version = 11 : i64} {
  func.func @kernel(%arg0: i32, %arg1: memref<1x144x32xbf16, #tpu.memory_space<vmem>>, %arg2: memref<9x32xf32, #tpu.memory_space<vmem>>, %arg3: memref<1x32xf32, #tpu.memory_space<vmem>>, %arg4: memref<1x42x128xbf16, #tpu.memory_space<vmem>>, %arg5: memref<9x128xf32, #tpu.memory_space<vmem>>, %arg6: memref<128x32xf32, #tpu.memory_space<vmem>>, %arg7: memref<1x32xf32, #tpu.memory_space<vmem>>, %arg8: memref<32x32xbf16, #tpu.memory_space<vmem>>, %arg9: memref<1x32xf32, #tpu.memory_space<vmem>>, %arg10: memref<32x64xbf16, #tpu.memory_space<vmem>>, %arg11: memref<1x64xf32, #tpu.memory_space<vmem>>, %arg12: memref<1x24x64xbf16, #tpu.memory_space<vmem>>, %arg13: memref<64x64xbf16, #tpu.memory_space<vmem>>, %arg14: memref<1x64xf32, #tpu.memory_space<vmem>>, %arg15: memref<1x24x64xbf16, #tpu.memory_space<vmem>>, %arg16: memref<24x32xf32, #tpu.memory_space<vmem>>) attributes {dimension_semantics = [#tpu.dimension_semantics<parallel>], iteration_bounds = array<i64: 2>, scalar_prefetch = 0 : i64, scratch_operands = 1 : i64, tpu.core_type = #tpu.core_type<tc>, window_params = [{transform_indices = @transform_0, window_bounds = array<i64: 1, 144, 32>}, {pipeline_mode = #tpu.pipeline_mode<synchronous>, transform_indices = @transform_1, window_bounds = array<i64: 9, 32>}, {pipeline_mode = #tpu.pipeline_mode<synchronous>, transform_indices = @transform_2, window_bounds = array<i64: 1, 32>}, {transform_indices = @transform_3, window_bounds = array<i64: 1, 42, 128>}, {pipeline_mode = #tpu.pipeline_mode<synchronous>, transform_indices = @transform_4, window_bounds = array<i64: 9, 128>}, {pipeline_mode = #tpu.pipeline_mode<synchronous>, transform_indices = @transform_5, window_bounds = array<i64: 128, 32>}, {pipeline_mode = #tpu.pipeline_mode<synchronous>, transform_indices = @transform_6, window_bounds = array<i64: 1, 32>}, {pipeline_mode = #tpu.pipeline_mode<synchronous>, transform_indices = @transform_7, window_bounds = array<i64: 32, 32>}, {pipeline_mode = #tpu.pipeline_mode<synchronous>, transform_indices = @transform_8, window_bounds = array<i64: 1, 32>}, {pipeline_mode = #tpu.pipeline_mode<synchronous>, transform_indices = @transform_9, window_bounds = array<i64: 32, 64>}, {pipeline_mode = #tpu.pipeline_mode<synchronous>, transform_indices = @transform_10, window_bounds = array<i64: 1, 64>}, {transform_indices = @transform_11, window_bounds = array<i64: 1, 24, 64>}, {pipeline_mode = #tpu.pipeline_mode<synchronous>, transform_indices = @transform_12, window_bounds = array<i64: 64, 64>}, {pipeline_mode = #tpu.pipeline_mode<synchronous>, transform_indices = @transform_13, window_bounds = array<i64: 1, 64>}, {transform_indices = @transform_14, window_bounds = array<i64: 1, 24, 64>}]} {
    %cst = arith.constant 0.000000e+00 : f32
    %0 = vector.broadcast %cst : f32 to vector<24x32xf32>
    %c0 = arith.constant 0 : index
    %c0_0 = arith.constant 0 : index
    %c0_1 = arith.constant 0 : index
    %1 = vector.load %arg1[%c0, %c0_0, %c0_1] : memref<1x144x32xbf16, #tpu.memory_space<vmem>>, vector<1x24x32xbf16>
    %2 = vector.shape_cast %1 : vector<1x24x32xbf16> to vector<24x32xbf16>
    %3 = arith.extf %2 : vector<24x32xbf16> to vector<24x32xf32>
    %c0_2 = arith.constant 0 : index
    %c0_3 = arith.constant 0 : index
    %4 = vector.load %arg2[%c0_2, %c0_3] : memref<9x32xf32, #tpu.memory_space<vmem>>, vector<1x32xf32>
    %5 = vector.broadcast %4 : vector<1x32xf32> to vector<24x32xf32>
    %6 = arith.mulf %3, %5 : vector<24x32xf32>
    %7 = arith.addf %0, %6 : vector<24x32xf32>
    %c0_4 = arith.constant 0 : index
    %c36 = arith.constant 36 : index
    %c0_5 = arith.constant 0 : index
    %8 = vector.load %arg1[%c0_4, %c36, %c0_5] : memref<1x144x32xbf16, #tpu.memory_space<vmem>>, vector<1x24x32xbf16>
    %9 = vector.shape_cast %8 : vector<1x24x32xbf16> to vector<24x32xbf16>
    %10 = arith.extf %9 : vector<24x32xbf16> to vector<24x32xf32>
    %c1 = arith.constant 1 : index
    %c0_6 = arith.constant 0 : index
    %11 = vector.load %arg2[%c1, %c0_6] : memref<9x32xf32, #tpu.memory_space<vmem>>, vector<1x32xf32>
    %12 = vector.broadcast %11 : vector<1x32xf32> to vector<24x32xf32>
    %13 = arith.mulf %10, %12 : vector<24x32xf32>
    %14 = arith.addf %7, %13 : vector<24x32xf32>
    %c0_7 = arith.constant 0 : index
    %c1_8 = arith.constant 1 : index
    %c0_9 = arith.constant 0 : index
    %15 = vector.load %arg1[%c0_7, %c1_8, %c0_9] : memref<1x144x32xbf16, #tpu.memory_space<vmem>>, vector<1x24x32xbf16>
    %16 = vector.shape_cast %15 : vector<1x24x32xbf16> to vector<24x32xbf16>
    %17 = arith.extf %16 : vector<24x32xbf16> to vector<24x32xf32>
    %c2 = arith.constant 2 : index
    %c0_10 = arith.constant 0 : index
    %18 = vector.load %arg2[%c2, %c0_10] : memref<9x32xf32, #tpu.memory_space<vmem>>, vector<1x32xf32>
    %19 = vector.broadcast %18 : vector<1x32xf32> to vector<24x32xf32>
    %20 = arith.mulf %17, %19 : vector<24x32xf32>
    %21 = arith.addf %14, %20 : vector<24x32xf32>
    %c0_11 = arith.constant 0 : index
    %c72 = arith.constant 72 : index
    %c0_12 = arith.constant 0 : index
    %22 = vector.load %arg1[%c0_11, %c72, %c0_12] : memref<1x144x32xbf16, #tpu.memory_space<vmem>>, vector<1x24x32xbf16>
    %23 = vector.shape_cast %22 : vector<1x24x32xbf16> to vector<24x32xbf16>
    %24 = arith.extf %23 : vector<24x32xbf16> to vector<24x32xf32>
    %c3 = arith.constant 3 : index
    %c0_13 = arith.constant 0 : index
    %25 = vector.load %arg2[%c3, %c0_13] : memref<9x32xf32, #tpu.memory_space<vmem>>, vector<1x32xf32>
    %26 = vector.broadcast %25 : vector<1x32xf32> to vector<24x32xf32>
    %27 = arith.mulf %24, %26 : vector<24x32xf32>
    %28 = arith.addf %21, %27 : vector<24x32xf32>
    %c0_14 = arith.constant 0 : index
    %c108 = arith.constant 108 : index
    %c0_15 = arith.constant 0 : index
    %29 = vector.load %arg1[%c0_14, %c108, %c0_15] : memref<1x144x32xbf16, #tpu.memory_space<vmem>>, vector<1x24x32xbf16>
    %30 = vector.shape_cast %29 : vector<1x24x32xbf16> to vector<24x32xbf16>
    %31 = arith.extf %30 : vector<24x32xbf16> to vector<24x32xf32>
    %c4 = arith.constant 4 : index
    %c0_16 = arith.constant 0 : index
    %32 = vector.load %arg2[%c4, %c0_16] : memref<9x32xf32, #tpu.memory_space<vmem>>, vector<1x32xf32>
    %33 = vector.broadcast %32 : vector<1x32xf32> to vector<24x32xf32>
    %34 = arith.mulf %31, %33 : vector<24x32xf32>
    %35 = arith.addf %28, %34 : vector<24x32xf32>
    %c0_17 = arith.constant 0 : index
    %c73 = arith.constant 73 : index
    %c0_18 = arith.constant 0 : index
    %36 = vector.load %arg1[%c0_17, %c73, %c0_18] : memref<1x144x32xbf16, #tpu.memory_space<vmem>>, vector<1x24x32xbf16>
    %37 = vector.shape_cast %36 : vector<1x24x32xbf16> to vector<24x32xbf16>
    %38 = arith.extf %37 : vector<24x32xbf16> to vector<24x32xf32>
    %c5 = arith.constant 5 : index
    %c0_19 = arith.constant 0 : index
    %39 = vector.load %arg2[%c5, %c0_19] : memref<9x32xf32, #tpu.memory_space<vmem>>, vector<1x32xf32>
    %40 = vector.broadcast %39 : vector<1x32xf32> to vector<24x32xf32>
    %41 = arith.mulf %38, %40 : vector<24x32xf32>
    %42 = arith.addf %35, %41 : vector<24x32xf32>
    %c0_20 = arith.constant 0 : index
    %c6 = arith.constant 6 : index
    %c0_21 = arith.constant 0 : index
    %43 = vector.load %arg1[%c0_20, %c6, %c0_21] : memref<1x144x32xbf16, #tpu.memory_space<vmem>>, vector<1x24x32xbf16>
    %44 = vector.shape_cast %43 : vector<1x24x32xbf16> to vector<24x32xbf16>
    %45 = arith.extf %44 : vector<24x32xbf16> to vector<24x32xf32>
    %c6_22 = arith.constant 6 : index
    %c0_23 = arith.constant 0 : index
    %46 = vector.load %arg2[%c6_22, %c0_23] : memref<9x32xf32, #tpu.memory_space<vmem>>, vector<1x32xf32>
    %47 = vector.broadcast %46 : vector<1x32xf32> to vector<24x32xf32>
    %48 = arith.mulf %45, %47 : vector<24x32xf32>
    %49 = arith.addf %42, %48 : vector<24x32xf32>
    %c0_24 = arith.constant 0 : index
    %c42 = arith.constant 42 : index
    %c0_25 = arith.constant 0 : index
    %50 = vector.load %arg1[%c0_24, %c42, %c0_25] : memref<1x144x32xbf16, #tpu.memory_space<vmem>>, vector<1x24x32xbf16>
    %51 = vector.shape_cast %50 : vector<1x24x32xbf16> to vector<24x32xbf16>
    %52 = arith.extf %51 : vector<24x32xbf16> to vector<24x32xf32>
    %c7 = arith.constant 7 : index
    %c0_26 = arith.constant 0 : index
    %53 = vector.load %arg2[%c7, %c0_26] : memref<9x32xf32, #tpu.memory_space<vmem>>, vector<1x32xf32>
    %54 = vector.broadcast %53 : vector<1x32xf32> to vector<24x32xf32>
    %55 = arith.mulf %52, %54 : vector<24x32xf32>
    %56 = arith.addf %49, %55 : vector<24x32xf32>
    %c0_27 = arith.constant 0 : index
    %c7_28 = arith.constant 7 : index
    %c0_29 = arith.constant 0 : index
    %57 = vector.load %arg1[%c0_27, %c7_28, %c0_29] : memref<1x144x32xbf16, #tpu.memory_space<vmem>>, vector<1x24x32xbf16>
    %58 = vector.shape_cast %57 : vector<1x24x32xbf16> to vector<24x32xbf16>
    %59 = arith.extf %58 : vector<24x32xbf16> to vector<24x32xf32>
    %c8 = arith.constant 8 : index
    %c0_30 = arith.constant 0 : index
    %60 = vector.load %arg2[%c8, %c0_30] : memref<9x32xf32, #tpu.memory_space<vmem>>, vector<1x32xf32>
    %61 = vector.broadcast %60 : vector<1x32xf32> to vector<24x32xf32>
    %62 = arith.mulf %59, %61 : vector<24x32xf32>
    %63 = arith.addf %56, %62 : vector<24x32xf32>
    %c0_31 = arith.constant 0 : index
    %c0_32 = arith.constant 0 : index
    %64 = vector.load %arg3[%c0_31, %c0_32] : memref<1x32xf32, #tpu.memory_space<vmem>>, vector<1x32xf32>
    %65 = vector.broadcast %64 : vector<1x32xf32> to vector<24x32xf32>
    %66 = arith.addf %63, %65 : vector<24x32xf32>
    %cst_33 = arith.constant 0.000000e+00 : f32
    %67 = vector.broadcast %cst_33 : f32 to vector<24x32xf32>
    %68 = arith.maximumf %66, %67 : vector<24x32xf32>
    %c0_34 = arith.constant 0 : index
    %c0_35 = arith.constant 0 : index
    %69 = vector.load %arg16[%c0_34, %c0_35] : memref<24x32xf32, #tpu.memory_space<vmem>>, vector<24x32xf32>
    tpu.vector_store %arg16[%c0_34, %c0_35], %68 {strides = array<i32>} : memref<24x32xf32, #tpu.memory_space<vmem>>, vector<24x32xf32>,
    %cst_36 = arith.constant 0.000000e+00 : f32
    %70 = vector.broadcast %cst_36 : f32 to vector<24x128xf32>
    %c0_37 = arith.constant 0 : index
    %c0_38 = arith.constant 0 : index
    %c0_39 = arith.constant 0 : index
    %71 = vector.load %arg4[%c0_37, %c0_38, %c0_39] : memref<1x42x128xbf16, #tpu.memory_space<vmem>>, vector<1x24x128xbf16>
    %72 = vector.shape_cast %71 : vector<1x24x128xbf16> to vector<24x128xbf16>
    %73 = arith.extf %72 : vector<24x128xbf16> to vector<24x128xf32>
    %c0_40 = arith.constant 0 : index
    %c0_41 = arith.constant 0 : index
    %74 = vector.load %arg5[%c0_40, %c0_41] : memref<9x128xf32, #tpu.memory_space<vmem>>, vector<1x128xf32>
    %75 = vector.broadcast %74 : vector<1x128xf32> to vector<24x128xf32>
    %76 = arith.mulf %73, %75 : vector<24x128xf32>
    %77 = arith.addf %70, %76 : vector<24x128xf32>
    %c0_42 = arith.constant 0 : index
    %c1_43 = arith.constant 1 : index
    %c0_44 = arith.constant 0 : index
    %78 = vector.load %arg4[%c0_42, %c1_43, %c0_44] : memref<1x42x128xbf16, #tpu.memory_space<vmem>>, vector<1x24x128xbf16>
    %79 = vector.shape_cast %78 : vector<1x24x128xbf16> to vector<24x128xbf16>
    %80 = arith.extf %79 : vector<24x128xbf16> to vector<24x128xf32>
    %c1_45 = arith.constant 1 : index
    %c0_46 = arith.constant 0 : index
    %81 = vector.load %arg5[%c1_45, %c0_46] : memref<9x128xf32, #tpu.memory_space<vmem>>, vector<1x128xf32>
    %82 = vector.broadcast %81 : vector<1x128xf32> to vector<24x128xf32>
    %83 = arith.mulf %80, %82 : vector<24x128xf32>
    %84 = arith.addf %77, %83 : vector<24x128xf32>
    %c0_47 = arith.constant 0 : index
    %c2_48 = arith.constant 2 : index
    %c0_49 = arith.constant 0 : index
    %85 = vector.load %arg4[%c0_47, %c2_48, %c0_49] : memref<1x42x128xbf16, #tpu.memory_space<vmem>>, vector<1x24x128xbf16>
    %86 = vector.shape_cast %85 : vector<1x24x128xbf16> to vector<24x128xbf16>
    %87 = arith.extf %86 : vector<24x128xbf16> to vector<24x128xf32>
    %c2_50 = arith.constant 2 : index
    %c0_51 = arith.constant 0 : index
    %88 = vector.load %arg5[%c2_50, %c0_51] : memref<9x128xf32, #tpu.memory_space<vmem>>, vector<1x128xf32>
    %89 = vector.broadcast %88 : vector<1x128xf32> to vector<24x128xf32>
    %90 = arith.mulf %87, %89 : vector<24x128xf32>
    %91 = arith.addf %84, %90 : vector<24x128xf32>
    %c0_52 = arith.constant 0 : index
    %c6_53 = arith.constant 6 : index
    %c0_54 = arith.constant 0 : index
    %92 = vector.load %arg4[%c0_52, %c6_53, %c0_54] : memref<1x42x128xbf16, #tpu.memory_space<vmem>>, vector<1x24x128xbf16>
    %93 = vector.shape_cast %92 : vector<1x24x128xbf16> to vector<24x128xbf16>
    %94 = arith.extf %93 : vector<24x128xbf16> to vector<24x128xf32>
    %c3_55 = arith.constant 3 : index
    %c0_56 = arith.constant 0 : index
    %95 = vector.load %arg5[%c3_55, %c0_56] : memref<9x128xf32, #tpu.memory_space<vmem>>, vector<1x128xf32>
    %96 = vector.broadcast %95 : vector<1x128xf32> to vector<24x128xf32>
    %97 = arith.mulf %94, %96 : vector<24x128xf32>
    %98 = arith.addf %91, %97 : vector<24x128xf32>
    %c0_57 = arith.constant 0 : index
    %c7_58 = arith.constant 7 : index
    %c0_59 = arith.constant 0 : index
    %99 = vector.load %arg4[%c0_57, %c7_58, %c0_59] : memref<1x42x128xbf16, #tpu.memory_space<vmem>>, vector<1x24x128xbf16>
    %100 = vector.shape_cast %99 : vector<1x24x128xbf16> to vector<24x128xbf16>
    %101 = arith.extf %100 : vector<24x128xbf16> to vector<24x128xf32>
    %c4_60 = arith.constant 4 : index
    %c0_61 = arith.constant 0 : index
    %102 = vector.load %arg5[%c4_60, %c0_61] : memref<9x128xf32, #tpu.memory_space<vmem>>, vector<1x128xf32>
    %103 = vector.broadcast %102 : vector<1x128xf32> to vector<24x128xf32>
    %104 = arith.mulf %101, %103 : vector<24x128xf32>
    %105 = arith.addf %98, %104 : vector<24x128xf32>
    %c0_62 = arith.constant 0 : index
    %c8_63 = arith.constant 8 : index
    %c0_64 = arith.constant 0 : index
    %106 = vector.load %arg4[%c0_62, %c8_63, %c0_64] : memref<1x42x128xbf16, #tpu.memory_space<vmem>>, vector<1x24x128xbf16>
    %107 = vector.shape_cast %106 : vector<1x24x128xbf16> to vector<24x128xbf16>
    %108 = arith.extf %107 : vector<24x128xbf16> to vector<24x128xf32>
    %c5_65 = arith.constant 5 : index
    %c0_66 = arith.constant 0 : index
    %109 = vector.load %arg5[%c5_65, %c0_66] : memref<9x128xf32, #tpu.memory_space<vmem>>, vector<1x128xf32>
    %110 = vector.broadcast %109 : vector<1x128xf32> to vector<24x128xf32>
    %111 = arith.mulf %108, %110 : vector<24x128xf32>
    %112 = arith.addf %105, %111 : vector<24x128xf32>
    %c0_67 = arith.constant 0 : index
    %c12 = arith.constant 12 : index
    %c0_68 = arith.constant 0 : index
    %113 = vector.load %arg4[%c0_67, %c12, %c0_68] : memref<1x42x128xbf16, #tpu.memory_space<vmem>>, vector<1x24x128xbf16>
    %114 = vector.shape_cast %113 : vector<1x24x128xbf16> to vector<24x128xbf16>
    %115 = arith.extf %114 : vector<24x128xbf16> to vector<24x128xf32>
    %c6_69 = arith.constant 6 : index
    %c0_70 = arith.constant 0 : index
    %116 = vector.load %arg5[%c6_69, %c0_70] : memref<9x128xf32, #tpu.memory_space<vmem>>, vector<1x128xf32>
    %117 = vector.broadcast %116 : vector<1x128xf32> to vector<24x128xf32>
    %118 = arith.mulf %115, %117 : vector<24x128xf32>
    %119 = arith.addf %112, %118 : vector<24x128xf32>
    %c0_71 = arith.constant 0 : index
    %c13 = arith.constant 13 : index
    %c0_72 = arith.constant 0 : index
    %120 = vector.load %arg4[%c0_71, %c13, %c0_72] : memref<1x42x128xbf16, #tpu.memory_space<vmem>>, vector<1x24x128xbf16>
    %121 = vector.shape_cast %120 : vector<1x24x128xbf16> to vector<24x128xbf16>
    %122 = arith.extf %121 : vector<24x128xbf16> to vector<24x128xf32>
    %c7_73 = arith.constant 7 : index
    %c0_74 = arith.constant 0 : index
    %123 = vector.load %arg5[%c7_73, %c0_74] : memref<9x128xf32, #tpu.memory_space<vmem>>, vector<1x128xf32>
    %124 = vector.broadcast %123 : vector<1x128xf32> to vector<24x128xf32>
    %125 = arith.mulf %122, %124 : vector<24x128xf32>
    %126 = arith.addf %119, %125 : vector<24x128xf32>
    %c0_75 = arith.constant 0 : index
    %c14 = arith.constant 14 : index
    %c0_76 = arith.constant 0 : index
    %127 = vector.load %arg4[%c0_75, %c14, %c0_76] : memref<1x42x128xbf16, #tpu.memory_space<vmem>>, vector<1x24x128xbf16>
    %128 = vector.shape_cast %127 : vector<1x24x128xbf16> to vector<24x128xbf16>
    %129 = arith.extf %128 : vector<24x128xbf16> to vector<24x128xf32>
    %c8_77 = arith.constant 8 : index
    %c0_78 = arith.constant 0 : index
    %130 = vector.load %arg5[%c8_77, %c0_78] : memref<9x128xf32, #tpu.memory_space<vmem>>, vector<1x128xf32>
    %131 = vector.broadcast %130 : vector<1x128xf32> to vector<24x128xf32>
    %132 = arith.mulf %129, %131 : vector<24x128xf32>
    %133 = arith.addf %126, %132 : vector<24x128xf32>
    %c0_79 = arith.constant 0 : index
    %c0_80 = arith.constant 0 : index
    %134 = vector.load %arg6[%c0_79, %c0_80] : memref<128x32xf32, #tpu.memory_space<vmem>>, vector<128x32xf32>
    %cst_81 = arith.constant dense<0.000000e+00> : vector<24x32xf32>
    %135 = tpu.matmul %133, %134, %cst_81 {dimension_numbers = #tpu.dot_dimension_numbers<[1], [0], [0], [1], [0, 0, 1, 1], [], []>} : vector<24x128xf32>, vector<128x32xf32>, vector<24x32xf32> -> vector<24x32xf32>
    %c0_82 = arith.constant 0 : index
    %c0_83 = arith.constant 0 : index
    %136 = vector.load %arg7[%c0_82, %c0_83] : memref<1x32xf32, #tpu.memory_space<vmem>>, vector<1x32xf32>
    %137 = vector.broadcast %136 : vector<1x32xf32> to vector<24x32xf32>
    %138 = arith.addf %135, %137 : vector<24x32xf32>
    %cst_84 = arith.constant 0.000000e+00 : f32
    %139 = vector.broadcast %cst_84 : f32 to vector<24x32xf32>
    %140 = arith.maximumf %138, %139 : vector<24x32xf32>
    %141 = arith.truncf %140 : vector<24x32xf32> to vector<24x32xbf16>
    %c0_85 = arith.constant 0 : index
    %c0_86 = arith.constant 0 : index
    %142 = vector.load %arg8[%c0_85, %c0_86] : memref<32x32xbf16, #tpu.memory_space<vmem>>, vector<32x32xbf16>
    %cst_87 = arith.constant dense<0.000000e+00> : vector<24x32xf32>
    %143 = tpu.matmul %141, %142, %cst_87 {dimension_numbers = #tpu.dot_dimension_numbers<[1], [0], [0], [1], [0, 0, 1, 1], [], []>} : vector<24x32xbf16>, vector<32x32xbf16>, vector<24x32xf32> -> vector<24x32xf32>
    %c0_88 = arith.constant 0 : index
    %c0_89 = arith.constant 0 : index
    %144 = vector.load %arg9[%c0_88, %c0_89] : memref<1x32xf32, #tpu.memory_space<vmem>>, vector<1x32xf32>
    %145 = vector.broadcast %144 : vector<1x32xf32> to vector<24x32xf32>
    %146 = arith.addf %143, %145 : vector<24x32xf32>
    %cst_90 = arith.constant 0.000000e+00 : f32
    %147 = vector.broadcast %cst_90 : f32 to vector<24x32xf32>
    %148 = arith.maximumf %146, %147 : vector<24x32xf32>
    %c0_91 = arith.constant 0 : index
    %c0_92 = arith.constant 0 : index
    %149 = vector.load %arg16[%c0_91, %c0_92] : memref<24x32xf32, #tpu.memory_space<vmem>>, vector<24x32xf32>
    %150 = arith.addf %149, %148 : vector<24x32xf32>
    %c0_93 = arith.constant 0 : index
    %c0_94 = arith.constant 0 : index
    %151 = vector.load %arg16[%c0_93, %c0_94] : memref<24x32xf32, #tpu.memory_space<vmem>>, vector<24x32xf32>
    tpu.vector_store %arg16[%c0_93, %c0_94], %150 {strides = array<i32>} : memref<24x32xf32, #tpu.memory_space<vmem>>, vector<24x32xf32>,
    %c0_95 = arith.constant 0 : index
    %c0_96 = arith.constant 0 : index
    %152 = vector.load %arg16[%c0_95, %c0_96] : memref<24x32xf32, #tpu.memory_space<vmem>>, vector<24x32xf32>
    %153 = arith.truncf %152 : vector<24x32xf32> to vector<24x32xbf16>
    %c0_97 = arith.constant 0 : index
    %c0_98 = arith.constant 0 : index
    %154 = vector.load %arg10[%c0_97, %c0_98] : memref<32x64xbf16, #tpu.memory_space<vmem>>, vector<32x64xbf16>
    %cst_99 = arith.constant dense<0.000000e+00> : vector<24x64xf32>
    %155 = tpu.matmul %153, %154, %cst_99 {dimension_numbers = #tpu.dot_dimension_numbers<[1], [0], [0], [1], [0, 0, 1, 1], [], []>} : vector<24x32xbf16>, vector<32x64xbf16>, vector<24x64xf32> -> vector<24x64xf32>
    %c0_100 = arith.constant 0 : index
    %c0_101 = arith.constant 0 : index
    %156 = vector.load %arg11[%c0_100, %c0_101] : memref<1x64xf32, #tpu.memory_space<vmem>>, vector<1x64xf32>
    %157 = vector.broadcast %156 : vector<1x64xf32> to vector<24x64xf32>
    %158 = arith.addf %155, %157 : vector<24x64xf32>
    %c0_102 = arith.constant 0 : index
    %c0_103 = arith.constant 0 : index
    %c0_104 = arith.constant 0 : index
    %159 = vector.load %arg12[%c0_102, %c0_103, %c0_104] : memref<1x24x64xbf16, #tpu.memory_space<vmem>>, vector<1x24x64xbf16>
    %160 = vector.shape_cast %159 : vector<1x24x64xbf16> to vector<24x64xbf16>
    %c0_105 = arith.constant 0 : index
    %c0_106 = arith.constant 0 : index
    %161 = vector.load %arg13[%c0_105, %c0_106] : memref<64x64xbf16, #tpu.memory_space<vmem>>, vector<64x64xbf16>
    %cst_107 = arith.constant dense<0.000000e+00> : vector<24x64xf32>
    %162 = tpu.matmul %160, %161, %cst_107 {dimension_numbers = #tpu.dot_dimension_numbers<[1], [0], [0], [1], [0, 0, 1, 1], [], []>} : vector<24x64xbf16>, vector<64x64xbf16>, vector<24x64xf32> -> vector<24x64xf32>
    %c0_108 = arith.constant 0 : index
    %c0_109 = arith.constant 0 : index
    %163 = vector.load %arg14[%c0_108, %c0_109] : memref<1x64xf32, #tpu.memory_space<vmem>>, vector<1x64xf32>
    %164 = vector.broadcast %163 : vector<1x64xf32> to vector<24x64xf32>
    %165 = arith.addf %162, %164 : vector<24x64xf32>
    %166 = arith.addf %158, %165 : vector<24x64xf32>
    %cst_110 = arith.constant 0.000000e+00 : f32
    %167 = vector.broadcast %cst_110 : f32 to vector<24x64xf32>
    %168 = arith.maximumf %166, %167 : vector<24x64xf32>
    %169 = arith.truncf %168 : vector<24x64xf32> to vector<24x64xbf16>
    %c0_111 = arith.constant 0 : index
    %c0_112 = arith.constant 0 : index
    %c0_113 = arith.constant 0 : index
    %170 = vector.load %arg15[%c0_111, %c0_112, %c0_113] : memref<1x24x64xbf16, #tpu.memory_space<vmem>>, vector<1x24x64xbf16>
    %171 = vector.shape_cast %170 : vector<1x24x64xbf16> to vector<24x64xbf16>
    %172 = vector.shape_cast %169 : vector<24x64xbf16> to vector<1x24x64xbf16>
    tpu.vector_store %arg15[%c0_111, %c0_112, %c0_113], %172 {strides = array<i32>} : memref<1x24x64xbf16, #tpu.memory_space<vmem>>, vector<1x24x64xbf16>,
    return
  }
  func.func @transform_0(%arg0: i32) -> (i32, i32, i32) {
    %c0_i32 = arith.constant 0 : i32
    %c0_i32_0 = arith.constant 0 : i32
    %c0_i32_1 = arith.constant 0 : i32
    return %arg0, %c0_i32, %c0_i32_0 : i32, i32, i32
  }
  func.func @transform_1(%arg0: i32) -> (i32, i32) {
    %c0_i32 = arith.constant 0 : i32
    %c0_i32_0 = arith.constant 0 : i32
    %c0_i32_1 = arith.constant 0 : i32
    return %c0_i32, %c0_i32_0 : i32, i32
  }
  func.func @transform_2(%arg0: i32) -> (i32, i32) {
    %c0_i32 = arith.constant 0 : i32
    %c0_i32_0 = arith.constant 0 : i32
    %c0_i32_1 = arith.constant 0 : i32
    return %c0_i32, %c0_i32_0 : i32, i32
  }
  func.func @transform_3(%arg0: i32) -> (i32, i32, i32) {
    %c0_i32 = arith.constant 0 : i32
    %c0_i32_0 = arith.constant 0 : i32
    %c0_i32_1 = arith.constant 0 : i32
    return %arg0, %c0_i32, %c0_i32_0 : i32, i32, i32
  }
  func.func @transform_4(%arg0: i32) -> (i32, i32) {
    %c0_i32 = arith.constant 0 : i32
    %c0_i32_0 = arith.constant 0 : i32
    %c0_i32_1 = arith.constant 0 : i32
    return %c0_i32, %c0_i32_0 : i32, i32
  }
  func.func @transform_5(%arg0: i32) -> (i32, i32) {
    %c0_i32 = arith.constant 0 : i32
    %c0_i32_0 = arith.constant 0 : i32
    %c0_i32_1 = arith.constant 0 : i32
    return %c0_i32, %c0_i32_0 : i32, i32
  }
  func.func @transform_6(%arg0: i32) -> (i32, i32) {
    %c0_i32 = arith.constant 0 : i32
    %c0_i32_0 = arith.constant 0 : i32
    %c0_i32_1 = arith.constant 0 : i32
    return %c0_i32, %c0_i32_0 : i32, i32
  }
  func.func @transform_7(%arg0: i32) -> (i32, i32) {
    %c0_i32 = arith.constant 0 : i32
    %c0_i32_0 = arith.constant 0 : i32
    %c0_i32_1 = arith.constant 0 : i32
    return %c0_i32, %c0_i32_0 : i32, i32
  }
  func.func @transform_8(%arg0: i32) -> (i32, i32) {
    %c0_i32 = arith.constant 0 : i32
    %c0_i32_0 = arith.constant 0 : i32
    %c0_i32_1 = arith.constant 0 : i32
    return %c0_i32, %c0_i32_0 : i32, i32
  }
  func.func @transform_9(%arg0: i32) -> (i32, i32) {
    %c0_i32 = arith.constant 0 : i32
    %c0_i32_0 = arith.constant 0 : i32
    %c0_i32_1 = arith.constant 0 : i32
    return %c0_i32, %c0_i32_0 : i32, i32
  }
  func.func @transform_10(%arg0: i32) -> (i32, i32) {
    %c0_i32 = arith.constant 0 : i32
    %c0_i32_0 = arith.constant 0 : i32
    %c0_i32_1 = arith.constant 0 : i32
    return %c0_i32, %c0_i32_0 : i32, i32
  }
  func.func @transform_11(%arg0: i32) -> (i32, i32, i32) {
    %c0_i32 = arith.constant 0 : i32
    %c0_i32_0 = arith.constant 0 : i32
    %c0_i32_1 = arith.constant 0 : i32
    return %arg0, %c0_i32, %c0_i32_0 : i32, i32, i32
  }
  func.func @transform_12(%arg0: i32) -> (i32, i32) {
    %c0_i32 = arith.constant 0 : i32
    %c0_i32_0 = arith.constant 0 : i32
    %c0_i32_1 = arith.constant 0 : i32
    return %c0_i32, %c0_i32_0 : i32, i32
  }
  func.func @transform_13(%arg0: i32) -> (i32, i32) {
    %c0_i32 = arith.constant 0 : i32
    %c0_i32_0 = arith.constant 0 : i32
    %c0_i32_1 = arith.constant 0 : i32
    return %c0_i32, %c0_i32_0 : i32, i32
  }
  func.func @transform_14(%arg0: i32) -> (i32, i32, i32) {
    %c0_i32 = arith.constant 0 : i32
    %c0_i32_0 = arith.constant 0 : i32
    %c0_i32_1 = arith.constant 0 : i32
    return %arg0, %c0_i32, %c0_i32_0 : i32, i32, i32
  }
}

</mosaic_0001>

<llo_original>
// kernel: block_forward.2
$region0: #{block_forward.2}
  #allocation0 [shape = 'u32[]', space=smem, size = 0x4, offset = 0x4, fixed_abs, tag = 'smem constant byte address 0x4 - core index']
  #allocation1 [shape = 'u32[72,128]{1,0:T(1,128)}', space=vmem, size = 0x9000, scoped, tag = 'internal scratch']
  %s0 = inlined_call_operand.vmem [shape: bf16[128,64], index: 0, kind: input, shape index: {}]
  %s1 = inlined_call_operand.vmem [shape: bf16[64,32], index: 1, kind: input, shape index: {}]
  %s2 = inlined_call_operand.vmem [shape: f32[1,32], index: 2, kind: input, shape index: {}]
  %s3 = inlined_call_operand.vmem [shape: bf16[128,32], index: 3, kind: output, shape index: {}]
  %s4 = sld [smem:[#allocation0]]
  $region45: #{block_forward.2} parent=0
    _
  %s6 = ssub.s32 1, %s4
  %s7 = scalar_select 0, %s6, %s4
  loop: start=0, step=1, limit=4
  $region2: #{block_forward.2} parent=0 // loop_pre_header
    _
  $region3: #{block_forward.2} parent=0 // loop_header
    %s9 = sphi 0, %s13
    %p10 = scmp.ge.s32.totalorder %s9, 4
    %s19 = sphi 0, %s21
    %s22 = sphi 0, %s19
    %s23 = sphi 0, %s22
    %s39 = sphi 0, %s23
    %s43 = sphi 0, %s43
    %s45 = sphi 0, %s43
    %s46 = sphi 0, %s45
    %s60 = sphi 0, %s46
    %s64 = sphi 0, %s64
    %s66 = sphi 0, %s64
    %s67 = sphi 0, %s66
    %s81 = sphi 0, %s67
    %s87 = sphi 0, %s89
    %s90 = sphi 0, %s87
    %s91 = sphi 0, %s90
    %s107 = sphi 0, %s91
  $region4: #{block_forward.2} parent=0 // loop_header_branch
    %12 = sbr.rel (%p10) target = $region8
  $region5: #{block_forward.2} parent=0 // loop_body
    %s14 = ssub.s32 %s9, 1
    %s15 = ssub.s32 %s9, 2
    %s16 = sadd.s32 %s9, 1
    %s17 = ssub.s32 %s9, %s16
    %p18 = scmp.eq.s32.totalorder %s17, 0
    %s20 = sadd.s32 %s19, 1
    %s21 = scalar_select %p18, %s19, %s20
    %p24 = pneg %p18
    %p25 = scmp.eq.s32.totalorder %s9, 1
    %p26 = por %p24, %p25
    %p27 = scmp.ne.s32.totalorder %s19, %s22
    %p28 = scmp.eq.s32.totalorder %s9, 0
    %p29 = por %p27, %p28
    %p30 = scmp.ne.s32.totalorder %s19, %s22
    %p31 = scmp.eq.s32.totalorder %s14, 1
    %p32 = por %p30, %p31
    %p33 = scmp.ne.s32.totalorder %s22, %s23
    %p34 = scmp.eq.s32.totalorder %s14, 0
    %p35 = por %p33, %p34
    %p36 = scmp.ne.s32.totalorder %s22, %s23
    %p37 = scmp.eq.s32.totalorder %s15, 1
    %p38 = por %p36, %p37
    %p40 = scmp.ne.s32.totalorder %s23, %s39
    %p41 = scmp.eq.s32.totalorder %s15, 0
    %p42 = por %p40, %p41
    %s44 = sadd.s32 %s43, 1
    %p47 = scmp.eq.s32.totalorder %s9, 1
    %p48 = scmp.ne.s32.totalorder %s43, %s45
    %p49 = scmp.eq.s32.totalorder %s9, 0
    %p50 = por %p48, %p49
    %p51 = scmp.ne.s32.totalorder %s43, %s45
    %p52 = scmp.eq.s32.totalorder %s14, 1
    %p53 = por %p51, %p52
    %p54 = scmp.ne.s32.totalorder %s45, %s46
    %p55 = scmp.eq.s32.totalorder %s14, 0
    %p56 = por %p54, %p55
    %p57 = scmp.ne.s32.totalorder %s45, %s46
    %p58 = scmp.eq.s32.totalorder %s15, 1
    %p59 = por %p57, %p58
    %p61 = scmp.ne.s32.totalorder %s46, %s60
    %p62 = scmp.eq.s32.totalorder %s15, 0
    %p63 = por %p61, %p62
    %s65 = sadd.s32 %s64, 1
    %p68 = scmp.eq.s32.totalorder %s9, 1
    %p69 = scmp.ne.s32.totalorder %s64, %s66
    %p70 = scmp.eq.s32.totalorder %s9, 0
    %p71 = por %p69, %p70
    %p72 = scmp.ne.s32.totalorder %s64, %s66
    %p73 = scmp.eq.s32.totalorder %s14, 1
    %p74 = por %p72, %p73
    %p75 = scmp.ne.s32.totalorder %s66, %s67
    %p76 = scmp.eq.s32.totalorder %s14, 0
    %p77 = por %p75, %p76
    %p78 = scmp.ne.s32.totalorder %s66, %s67
    %p79 = scmp.eq.s32.totalorder %s15, 1
    %p80 = por %p78, %p79
    %p82 = scmp.ne.s32.totalorder %s67, %s81
    %p83 = scmp.eq.s32.totalorder %s15, 0
    %p84 = por %p82, %p83
    %s85 = ssub.s32 %s9, %s16
    %p86 = scmp.eq.s32.totalorder %s85, 0
    %s88 = sadd.s32 %s87, 1
    %s89 = scalar_select %p86, %s87, %s88
    %p92 = pneg %p86
    %p93 = scmp.eq.s32.totalorder %s9, 1
    %p94 = por %p92, %p93
    %p95 = scmp.ne.s32.totalorder %s87, %s90
    %p96 = scmp.eq.s32.totalorder %s9, 0
    %p97 = por %p95, %p96
    %p98 = scmp.ne.s32.totalorder %s87, %s90
    %p99 = scmp.eq.s32.totalorder %s14, 1
    %p100 = por %p98, %p99
    %p101 = scmp.ne.s32.totalorder %s90, %s91
    %p102 = scmp.eq.s32.totalorder %s14, 0
    %p103 = por %p101, %p102
    %p104 = scmp.ne.s32.totalorder %s90, %s91
    %p105 = scmp.eq.s32.totalorder %s15, 1
    %p106 = por %p104, %p105
    %p108 = scmp.ne.s32.totalorder %s91, %s107
    %p109 = scmp.eq.s32.totalorder %s15, 0
    %p110 = por %p108, %p109
    %p111 = scmp.le.s32.totalorder 1, %s9
    %p112 = scmp.lt.s32.totalorder %s9, 3
    %p113 = pnand %p111, %p112
    %p114 = pneg %p113
    // Predicated region
    $region9: #{block_forward.2} parent=5 // pred_check
      _
    $region10: #{block_forward.2} parent=5 // pred_check_branch
      %116 = sbr.rel (%p113) target = $region12
    $region11: #{block_forward.2} parent=5 // pred_region
      %s117 = ssub.s32 %s9, 1
      // Predicated region
      $region13: #{block_forward.2} parent=11 // pred_check
        %p118 = pneg %p56
      $region14: #{block_forward.2} parent=11 // pred_check_branch
        %120 = sbr.rel (%p118) target = $region16
      $region15: #{block_forward.2} parent=11 // pred_region
        _
      $region16: #{block_forward.2} parent=11 // pred_fallthru
        _
      // Predicated region
      $region17: #{block_forward.2} parent=11 // pred_check
        %p121 = pneg %p77
      $region18: #{block_forward.2} parent=11 // pred_check_branch
        %123 = sbr.rel (%p121) target = $region20
      $region19: #{block_forward.2} parent=11 // pred_region
        _
      $region20: #{block_forward.2} parent=11 // pred_fallthru
        _
    $region12: #{block_forward.2} parent=5 // pred_fallthru
      _
    %p124 = scmp.lt.s32.totalorder %s9, 2
    // Predicated region
    $region21: #{block_forward.2} parent=5 // pred_check
      %p125 = pneg %p124
    $region22: #{block_forward.2} parent=5 // pred_check_branch
      %127 = sbr.rel (%p125) target = $region24
    $region23: #{block_forward.2} parent=5 // pred_region
      // Predicated region
      $region25: #{block_forward.2} parent=23 // pred_check
        %p128 = pneg %p29
      $region26: #{block_forward.2} parent=23 // pred_check_branch
        %130 = sbr.rel (%p128) target = $region28
      $region27: #{block_forward.2} parent=23 // pred_region
        %s131 = smul.u32 8, %s9
        %p132 = scmp.lt.s32.totalorder %s131, 15
        %s133 = scalar_select %p132, %s131, 15
        %s134 = smul.addr %s133, 4
        %s135 = scalar_lea.vmem %s0, %s134
        %s136 = smul.u32 8, %s9
      $region28: #{block_forward.2} parent=23 // pred_fallthru
        _
    $region24: #{block_forward.2} parent=5 // pred_fallthru
      _
    %p137 = scmp.le.s32.totalorder 1, %s9
    %p138 = scmp.lt.s32.totalorder %s9, 3
    %p139 = pnand %p137, %p138
    %p140 = pneg %p139
    // Predicated region
    $region29: #{block_forward.2} parent=5 // pred_check
      _
    $region30: #{block_forward.2} parent=5 // pred_check_branch
      %142 = sbr.rel (%p139) target = $region32
    $region31: #{block_forward.2} parent=5 // pred_region
      %s143 = ssub.s32 %s9, 1
      %s144 = smul.u32 8, %s14
      %p145 = scmp.lt.s32.totalorder %s144, 15
      %s146 = scalar_select %p145, %s144, 15
      %s147 = smul.addr %s146, 4
      %s148 = scalar_lea.vmem %s0, %s147
      %p149 = pneg %p35
      %p150 = pneg %p32
      %p151 = pneg %p56
      %p152 = pneg %p53
      %p153 = pneg %p77
      %p154 = pneg %p74
      %p155 = pneg %p103
      %p156 = pneg %p100
      %s157 = smul.u32 8, %s14
      %p158 = scmp.lt.s32.totalorder %s157, 15
      %s159 = scalar_select %p158, %s157, 15
      %s160 = smul.addr %s159, 4
      %s161 = scalar_lea.vmem %s3, %s160
      %s162 = smul.u32 8, %s14
      %p163 = scmp.lt.s32.totalorder %s162, 15
      %s164 = scalar_select %p163, %s162, 15
      %s165 = smul.addr %s164, 4
      %s166 = scalar_lea.vmem %s0, %s165
      %s167 = smul.u32 8, %s14
      %s168 = smul.u32 8, %s14
      %p169 = scmp.lt.s32.totalorder %s168, 15
      %s170 = scalar_select %p169, %s168, 15
      %s171 = smul.addr %s170, 4
      %s172 = scalar_lea.vmem %s3, %s171
      %s173 = smul.u32 8, %s14
      %v175 = vld [vmem:[%s166] sm:$0xf]
      %v176 = vld [vmem:[%s166 + $0x4] sm:$0xf]
      %v177 = vld [vmem:[%s166 + $0x8] sm:$0xf]
      %v178 = vld [vmem:[%s166 + $0xc] sm:$0xf]
      %v179 = vld [vmem:[%s166 + $0x10] sm:$0xf]
      %v180 = vld [vmem:[%s166 + $0x14] sm:$0xf]
      %v181 = vld [vmem:[%s166 + $0x18] sm:$0xf]
      %v182 = vld [vmem:[%s166 + $0x1c] sm:$0xf]
      %v183 = vld [vmem:[%s1] sm:$0xf]
      %v184 = vld [vmem:[%s1 + $0x4] sm:$0xf]
      %v185 = vld [vmem:[%s1 + $0x8] sm:$0xf]
      %v186 = vld [vmem:[%s1 + $0xc] sm:$0xf]
      %v187 = vld [vmem:[%s1 + $0x10] sm:$0xf]
      %v188 = vld [vmem:[%s1 + $0x14] sm:$0xf]
      %v189 = vld [vmem:[%s1 + $0x18] sm:$0xf]
      %v190 = vld [vmem:[%s1 + $0x1c] sm:$0xf]
      %v191 = vld [vmem:[%s2] sm:$0x1]
      %v193 = vperm.slane %v191, 0
      %v203 = vunpack.c.l.b16 %v175
      %v204 = vunpack.c.l.b16 %v176
      %v205 = vunpack.c.l.b16 %v177
      %v206 = vunpack.c.l.b16 %v178
      %v207 = vunpack.c.l.b16 %v179
      %v208 = vunpack.c.l.b16 %v180
      %v209 = vunpack.c.l.b16 %v181
      %v210 = vunpack.c.l.b16 %v182
      %v211 = vpack.c.b16 %v204, %v203
      %v212 = vpack.c.b16 %v206, %v205
      %v213 = vpack.c.b16 %v208, %v207
      %v214 = vpack.c.b16 %v210, %v209
      %v223 = vunpack.c.l.b16 %v183
      %v224 = vunpack.c.l.b16 %v184
      %v225 = vunpack.c.l.b16 %v185
      %v226 = vunpack.c.l.b16 %v186
      %v227 = vunpack.c.l.b16 %v187
      %v228 = vunpack.c.l.b16 %v188
      %v229 = vunpack.c.l.b16 %v189
      %v230 = vunpack.c.l.b16 %v190
      %v231 = vpack.c.b16 %v224, %v223
      %v232 = vpack.c.b16 %v226, %v225
      %v233 = vpack.c.b16 %v228, %v227
      %v234 = vpack.c.b16 %v230, %v229
      %vm239 = vcmask 523264
      %v241 = vsel %vm239, %v211, 0
      %v244 = vsel %vm239, %v212, 0
      %v247 = vsel %vm239, %v213, 0
      %v250 = vsel %vm239, %v214, 0
      %252 = vmatpush.bf16.msra.mxu0 0
      %253 = vmatpush.bf16.msra.mxu0 0
      %254 = vmatpush.bf16.msra.mxu0 0
      %255 = vmatpush.bf16.msra.mxu0 0
      %256 = vmatpush.bf16.msra.mxu0 %v234
      %257 = vmatpush.bf16.msra.mxu0 %v233
      %258 = vmatpush.bf16.msra.mxu0 %v232
      %259 = vmatpush.bf16.msra.mxu0 %v231
      %260 = vmatmul.bf16.gmra.mxu0 %v241
      %v261 = vpop.f32.mrf.mxu0
      %v262 = vadd.f32 %v193, %v261
      %v263 = vpop.f32.mrf.mxu0
      %v264 = vadd.f32 %v193, %v263
      %265 = vmatmul.bf16.gmra.mxu0 %v244
      %v266 = vpop.f32.mrf.mxu0
      %v267 = vadd.f32 %v193, %v266
      %v268 = vpop.f32.mrf.mxu0
      %v269 = vadd.f32 %v193, %v268
      %270 = vmatmul.bf16.gmra.mxu0 %v247
      %v271 = vpop.f32.mrf.mxu0
      %v272 = vadd.f32 %v193, %v271
      %v273 = vpop.f32.mrf.mxu0
      %v274 = vadd.f32 %v193, %v273
      %275 = vmatmul.bf16.gmra.mxu0 %v250
      %v276 = vpop.f32.mrf.mxu0
      %v277 = vadd.f32 %v193, %v276
      %v278 = vpop.f32.mrf.mxu0
      %v279 = vadd.f32 %v193, %v278
      %280 = vdwg.mxu0
      %v281 = vmax.f32 %v262, 0.0
      %v282 = vmax.f32 %v264, 0.0
      %v283 = vmax.f32 %v267, 0.0
      %v284 = vmax.f32 %v269, 0.0
      %v285 = vmax.f32 %v272, 0.0
      %v286 = vmax.f32 %v274, 0.0
      %v287 = vmax.f32 %v277, 0.0
      %v288 = vmax.f32 %v279, 0.0
      %v289 = vpack.c.bf16 %v281, %v281
      %v290 = vpack.c.bf16 %v282, %v282
      %v291 = vpack.c.bf16 %v283, %v283
      %v292 = vpack.c.bf16 %v284, %v284
      %v293 = vpack.c.bf16 %v285, %v285
      %v294 = vpack.c.bf16 %v286, %v286
      %v295 = vpack.c.bf16 %v287, %v287
      %v296 = vpack.c.bf16 %v288, %v288
      %vm297 = vcmask 257024
      %298 = vst.msk [vmem:[%s172] sm:$0xf] %vm297, %v289
      %299 = vst.msk [vmem:[%s172 + $0x4] sm:$0xf] %vm297, %v290
      %300 = vst.msk [vmem:[%s172 + $0x8] sm:$0xf] %vm297, %v291
      %301 = vst.msk [vmem:[%s172 + $0xc] sm:$0xf] %vm297, %v292
      %302 = vst.msk [vmem:[%s172 + $0x10] sm:$0xf] %vm297, %v293
      %303 = vst.msk [vmem:[%s172 + $0x14] sm:$0xf] %vm297, %v294
      %304 = vst.msk [vmem:[%s172 + $0x18] sm:$0xf] %vm297, %v295
      %305 = vst.msk [vmem:[%s172 + $0x1c] sm:$0xf] %vm297, %v296
      %s306 = smul.u32 8, %s14
      %p307 = scmp.lt.s32.totalorder %s306, 15
      %s308 = scalar_select %p307, %s306, 15
      %s309 = smul.addr %s308, 4
      %s310 = scalar_lea.vmem %s3, %s309
      // Predicated region
      $region33: #{block_forward.2} parent=31 // pred_check
        %p311 = pneg %p100
      $region34: #{block_forward.2} parent=31 // pred_check_branch
        %313 = sbr.rel (%p311) target = $region36
      $region35: #{block_forward.2} parent=31 // pred_region
        %s314 = smul.u32 8, %s14
      $region36: #{block_forward.2} parent=31 // pred_fallthru
        _
    $region32: #{block_forward.2} parent=5 // pred_fallthru
      _
    %p315 = scmp.le.s32.totalorder 2, %s9
    // Predicated region
    $region37: #{block_forward.2} parent=5 // pred_check
      %p316 = pneg %p315
    $region38: #{block_forward.2} parent=5 // pred_check_branch
      %318 = sbr.rel (%p316) target = $region40
    $region39: #{block_forward.2} parent=5 // pred_region
      %s319 = ssub.s32 %s9, 2
      // Predicated region
      $region41: #{block_forward.2} parent=39 // pred_check
        %p320 = pneg %p106
      $region42: #{block_forward.2} parent=39 // pred_check_branch
        %322 = sbr.rel (%p320) target = $region44
      $region43: #{block_forward.2} parent=39 // pred_region
        %s323 = smul.u32 8, %s15
        %p324 = scmp.lt.s32.totalorder %s323, 15
        %s325 = scalar_select %p324, %s323, 15
        %s326 = smul.addr %s325, 4
        %s327 = scalar_lea.vmem %s3, %s326
      $region44: #{block_forward.2} parent=39 // pred_fallthru
        _
    $region40: #{block_forward.2} parent=5 // pred_fallthru
      _
  $region6: #{block_forward.2} parent=0 // loop_footer
    %s13 = sadd.s32 1, %s9
  $region7: #{block_forward.2} parent=0 // loop_footer_branch
    %8 = sbr.rel target = $region3
  $region8: #{block_forward.2} parent=0 // loop_exit
    _

// kernel: squeeze.7
$region0: #{squeeze.7}
  %s0 = inlined_call_operand.vmem [shape: f32[32,3,3], index: 0, kind: input, shape index: {}]
  %s1 = inlined_call_operand.vmem [shape: f32[32,9], index: 1, kind: output, shape index: {}]
  $region1: #{squeeze.7} parent=0
    #allocation0 [shape = 'u8[12288]{0}', space=vmem, size = 0x3000, scoped, tag = 'scoped mem for input reshape']
    %s3 = ssub.s32 16, 1
    %s4 = scalar_lea.vmem %s0, 8
    %v5 = vld [vmem:[%s4] sm:%s3]
    %s6 = scalar_lea.vmem [#allocation0], 16
    %7 = vst [vmem:[%s6] sm:%s3] %v5
    %s8 = scalar_lea.vmem %s0, 4
    %v9 = vld [vmem:[%s8] sm:%s3]
    %s10 = scalar_lea.vmem [#allocation0], 8
    %11 = vst [vmem:[%s10] sm:%s3] %v9
    %v12 = vld [vmem:[%s0] sm:%s3]
    %13 = vst [vmem:[#allocation0] sm:%s3] %v12
    %v14 = vld [vmem:[#allocation0] sm:$0x7]
    %vm15 = vcmask 261120
    %16 = vst.msk [vmem:[%s1] sm:$0x7] %vm15, %v14
    %s17 = scalar_lea.vmem [#allocation0], 8
    %v18 = vld [vmem:[%s17] sm:$0x7]
    %vm19 = vcmask 261120
    %s20 = scalar_lea.vmem %s1, 3
    %21 = vst.msk [vmem:[%s20] sm:$0x7] %vm19, %v18
    %s22 = scalar_lea.vmem [#allocation0], 16
    %v23 = vld [vmem:[%s22] sm:$0x7]
    %vm24 = vcmask 261120
    %s25 = scalar_lea.vmem %s1, 6
    %26 = vst.msk [vmem:[%s25] sm:$0x7] %vm24, %v23

// kernel: block_forward.3
$region0: #{block_forward.3}
  #allocation0 [shape = 'u32[]', space=smem, size = 0x4, offset = 0x4, fixed_abs, tag = 'smem constant byte address 0x4 - core index']
  #allocation1 [shape = 'u32[72,128]{1,0:T(1,128)}', space=vmem, size = 0x9000, scoped, tag = 'internal scratch']
  #allocation2 [shape = 'f32[24,32]{1,0:T(8,128)}', space=vmem, size = 0x3000, scoped, tag = 'scratch operand']
  %s0 = inlined_call_operand.vmem [shape: bf16[2,144,32], index: 0, kind: input, shape index: {}]
  %s1 = inlined_call_operand.vmem [shape: f32[9,32], index: 1, kind: input, shape index: {}]
  %s2 = inlined_call_operand.vmem [shape: f32[1,32], index: 2, kind: input, shape index: {}]
  %s3 = inlined_call_operand.vmem [shape: bf16[2,42,128], index: 3, kind: input, shape index: {}]
  %s4 = inlined_call_operand.vmem [shape: f32[9,128], index: 4, kind: input, shape index: {}]
  %s5 = inlined_call_operand.vmem [shape: f32[128,32], index: 5, kind: input, shape index: {}]
  %s6 = inlined_call_operand.vmem [shape: f32[1,32], index: 6, kind: input, shape index: {}]
  %s7 = inlined_call_operand.vmem [shape: bf16[32,32], index: 7, kind: input, shape index: {}]
  %s8 = inlined_call_operand.vmem [shape: f32[1,32], index: 8, kind: input, shape index: {}]
  %s9 = inlined_call_operand.vmem [shape: bf16[32,64], index: 9, kind: input, shape index: {}]
  %s10 = inlined_call_operand.vmem [shape: f32[1,64], index: 10, kind: input, shape index: {}]
  %s11 = inlined_call_operand.vmem [shape: bf16[2,24,64], index: 11, kind: input, shape index: {}]
  %s12 = inlined_call_operand.vmem [shape: bf16[64,64], index: 12, kind: input, shape index: {}]
  %s13 = inlined_call_operand.vmem [shape: f32[1,64], index: 13, kind: input, shape index: {}]
  %s14 = inlined_call_operand.vmem [shape: bf16[2,24,64], index: 14, kind: output, shape index: {}]
  %s15 = sld [smem:[#allocation0]]
  $region89: #{block_forward.3} parent=0
    _
  %s17 = ssub.s32 1, %s15
  %s18 = scalar_select 0, %s17, %s15
  loop: start=0, step=1, limit=4
  $region2: #{block_forward.3} parent=0 // loop_pre_header
    _
  $region3: #{block_forward.3} parent=0 // loop_header
    %s20 = sphi 0, %s24
    %p21 = scmp.ge.s32.totalorder %s20, 4
    %s30 = sphi 0, %s32
    %s33 = sphi 0, %s30
    %s34 = sphi 0, %s33
    %s50 = sphi 0, %s34
    %s54 = sphi 0, %s54
    %s56 = sphi 0, %s54
    %s57 = sphi 0, %s56
    %s71 = sphi 0, %s57
    %s75 = sphi 0, %s75
    %s77 = sphi 0, %s75
    %s78 = sphi 0, %s77
    %s92 = sphi 0, %s78
    %s98 = sphi 0, %s100
    %s101 = sphi 0, %s98
    %s102 = sphi 0, %s101
    %s118 = sphi 0, %s102
    %s122 = sphi 0, %s122
    %s124 = sphi 0, %s122
    %s125 = sphi 0, %s124
    %s139 = sphi 0, %s125
    %s143 = sphi 0, %s143
    %s145 = sphi 0, %s143
    %s146 = sphi 0, %s145
    %s160 = sphi 0, %s146
    %s164 = sphi 0, %s164
    %s166 = sphi 0, %s164
    %s167 = sphi 0, %s166
    %s181 = sphi 0, %s167
    %s185 = sphi 0, %s185
    %s187 = sphi 0, %s185
    %s188 = sphi 0, %s187
    %s202 = sphi 0, %s188
    %s206 = sphi 0, %s206
    %s208 = sphi 0, %s206
    %s209 = sphi 0, %s208
    %s223 = sphi 0, %s209
    %s227 = sphi 0, %s227
    %s229 = sphi 0, %s227
    %s230 = sphi 0, %s229
    %s244 = sphi 0, %s230
    %s248 = sphi 0, %s248
    %s250 = sphi 0, %s248
    %s251 = sphi 0, %s250
    %s265 = sphi 0, %s251
    %s271 = sphi 0, %s273
    %s274 = sphi 0, %s271
    %s275 = sphi 0, %s274
    %s291 = sphi 0, %s275
    %s295 = sphi 0, %s295
    %s297 = sphi 0, %s295
    %s298 = sphi 0, %s297
    %s312 = sphi 0, %s298
    %s316 = sphi 0, %s316
    %s318 = sphi 0, %s316
    %s319 = sphi 0, %s318
    %s333 = sphi 0, %s319
    %s339 = sphi 0, %s341
    %s342 = sphi 0, %s339
    %s343 = sphi 0, %s342
    %s359 = sphi 0, %s343
  $region4: #{block_forward.3} parent=0 // loop_header_branch
    %23 = sbr.rel (%p21) target = $region8
  $region5: #{block_forward.3} parent=0 // loop_body
    %s25 = ssub.s32 %s20, 1
    %s26 = ssub.s32 %s20, 2
    %s27 = sadd.s32 %s20, 1
    %s28 = ssub.s32 %s20, %s27
    %p29 = scmp.eq.s32.totalorder %s28, 0
    %s31 = sadd.s32 %s30, 1
    %s32 = scalar_select %p29, %s30, %s31
    %p35 = pneg %p29
    %p36 = scmp.eq.s32.totalorder %s20, 1
    %p37 = por %p35, %p36
    %p38 = scmp.ne.s32.totalorder %s30, %s33
    %p39 = scmp.eq.s32.totalorder %s20, 0
    %p40 = por %p38, %p39
    %p41 = scmp.ne.s32.totalorder %s30, %s33
    %p42 = scmp.eq.s32.totalorder %s25, 1
    %p43 = por %p41, %p42
    %p44 = scmp.ne.s32.totalorder %s33, %s34
    %p45 = scmp.eq.s32.totalorder %s25, 0
    %p46 = por %p44, %p45
    %p47 = scmp.ne.s32.totalorder %s33, %s34
    %p48 = scmp.eq.s32.totalorder %s26, 1
    %p49 = por %p47, %p48
    %p51 = scmp.ne.s32.totalorder %s34, %s50
    %p52 = scmp.eq.s32.totalorder %s26, 0
    %p53 = por %p51, %p52
    %s55 = sadd.s32 %s54, 1
    %p58 = scmp.eq.s32.totalorder %s20, 1
    %p59 = scmp.ne.s32.totalorder %s54, %s56
    %p60 = scmp.eq.s32.totalorder %s20, 0
    %p61 = por %p59, %p60
    %p62 = scmp.ne.s32.totalorder %s54, %s56
    %p63 = scmp.eq.s32.totalorder %s25, 1
    %p64 = por %p62, %p63
    %p65 = scmp.ne.s32.totalorder %s56, %s57
    %p66 = scmp.eq.s32.totalorder %s25, 0
    %p67 = por %p65, %p66
    %p68 = scmp.ne.s32.totalorder %s56, %s57
    %p69 = scmp.eq.s32.totalorder %s26, 1
    %p70 = por %p68, %p69
    %p72 = scmp.ne.s32.totalorder %s57, %s71
    %p73 = scmp.eq.s32.totalorder %s26, 0
    %p74 = por %p72, %p73
    %s76 = sadd.s32 %s75, 1
    %p79 = scmp.eq.s32.totalorder %s20, 1
    %p80 = scmp.ne.s32.totalorder %s75, %s77
    %p81 = scmp.eq.s32.totalorder %s20, 0
    %p82 = por %p80, %p81
    %p83 = scmp.ne.s32.totalorder %s75, %s77
    %p84 = scmp.eq.s32.totalorder %s25, 1
    %p85 = por %p83, %p84
    %p86 = scmp.ne.s32.totalorder %s77, %s78
    %p87 = scmp.eq.s32.totalorder %s25, 0
    %p88 = por %p86, %p87
    %p89 = scmp.ne.s32.totalorder %s77, %s78
    %p90 = scmp.eq.s32.totalorder %s26, 1
    %p91 = por %p89, %p90
    %p93 = scmp.ne.s32.totalorder %s78, %s92
    %p94 = scmp.eq.s32.totalorder %s26, 0
    %p95 = por %p93, %p94
    %s96 = ssub.s32 %s20, %s27
    %p97 = scmp.eq.s32.totalorder %s96, 0
    %s99 = sadd.s32 %s98, 1
    %s100 = scalar_select %p97, %s98, %s99
    %p103 = pneg %p97
    %p104 = scmp.eq.s32.totalorder %s20, 1
    %p105 = por %p103, %p104
    %p106 = scmp.ne.s32.totalorder %s98, %s101
    %p107 = scmp.eq.s32.totalorder %s20, 0
    %p108 = por %p106, %p107
    %p109 = scmp.ne.s32.totalorder %s98, %s101
    %p110 = scmp.eq.s32.totalorder %s25, 1
    %p111 = por %p109, %p110
    %p112 = scmp.ne.s32.totalorder %s101, %s102
    %p113 = scmp.eq.s32.totalorder %s25, 0
    %p114 = por %p112, %p113
    %p115 = scmp.ne.s32.totalorder %s101, %s102
    %p116 = scmp.eq.s32.totalorder %s26, 1
    %p117 = por %p115, %p116
    %p119 = scmp.ne.s32.totalorder %s102, %s118
    %p120 = scmp.eq.s32.totalorder %s26, 0
    %p121 = por %p119, %p120
    %s123 = sadd.s32 %s122, 1
    %p126 = scmp.eq.s32.totalorder %s20, 1
    %p127 = scmp.ne.s32.totalorder %s122, %s124
    %p128 = scmp.eq.s32.totalorder %s20, 0
    %p129 = por %p127, %p128
    %p130 = scmp.ne.s32.totalorder %s122, %s124
    %p131 = scmp.eq.s32.totalorder %s25, 1
    %p132 = por %p130, %p131
    %p133 = scmp.ne.s32.totalorder %s124, %s125
    %p134 = scmp.eq.s32.totalorder %s25, 0
    %p135 = por %p133, %p134
    %p136 = scmp.ne.s32.totalorder %s124, %s125
    %p137 = scmp.eq.s32.totalorder %s26, 1
    %p138 = por %p136, %p137
    %p140 = scmp.ne.s32.totalorder %s125, %s139
    %p141 = scmp.eq.s32.totalorder %s26, 0
    %p142 = por %p140, %p141
    %s144 = sadd.s32 %s143, 1
    %p147 = scmp.eq.s32.totalorder %s20, 1
    %p148 = scmp.ne.s32.totalorder %s143, %s145
    %p149 = scmp.eq.s32.totalorder %s20, 0
    %p150 = por %p148, %p149
    %p151 = scmp.ne.s32.totalorder %s143, %s145
    %p152 = scmp.eq.s32.totalorder %s25, 1
    %p153 = por %p151, %p152
    %p154 = scmp.ne.s32.totalorder %s145, %s146
    %p155 = scmp.eq.s32.totalorder %s25, 0
    %p156 = por %p154, %p155
    %p157 = scmp.ne.s32.totalorder %s145, %s146
    %p158 = scmp.eq.s32.totalorder %s26, 1
    %p159 = por %p157, %p158
    %p161 = scmp.ne.s32.totalorder %s146, %s160
    %p162 = scmp.eq.s32.totalorder %s26, 0
    %p163 = por %p161, %p162
    %s165 = sadd.s32 %s164, 1
    %p168 = scmp.eq.s32.totalorder %s20, 1
    %p169 = scmp.ne.s32.totalorder %s164, %s166
    %p170 = scmp.eq.s32.totalorder %s20, 0
    %p171 = por %p169, %p170
    %p172 = scmp.ne.s32.totalorder %s164, %s166
    %p173 = scmp.eq.s32.totalorder %s25, 1
    %p174 = por %p172, %p173
    %p175 = scmp.ne.s32.totalorder %s166, %s167
    %p176 = scmp.eq.s32.totalorder %s25, 0
    %p177 = por %p175, %p176
    %p178 = scmp.ne.s32.totalorder %s166, %s167
    %p179 = scmp.eq.s32.totalorder %s26, 1
    %p180 = por %p178, %p179
    %p182 = scmp.ne.s32.totalorder %s167, %s181
    %p183 = scmp.eq.s32.totalorder %s26, 0
    %p184 = por %p182, %p183
    %s186 = sadd.s32 %s185, 1
    %p189 = scmp.eq.s32.totalorder %s20, 1
    %p190 = scmp.ne.s32.totalorder %s185, %s187
    %p191 = scmp.eq.s32.totalorder %s20, 0
    %p192 = por %p190, %p191
    %p193 = scmp.ne.s32.totalorder %s185, %s187
    %p194 = scmp.eq.s32.totalorder %s25, 1
    %p195 = por %p193, %p194
    %p196 = scmp.ne.s32.totalorder %s187, %s188
    %p197 = scmp.eq.s32.totalorder %s25, 0
    %p198 = por %p196, %p197
    %p199 = scmp.ne.s32.totalorder %s187, %s188
    %p200 = scmp.eq.s32.totalorder %s26, 1
    %p201 = por %p199, %p200
    %p203 = scmp.ne.s32.totalorder %s188, %s202
    %p204 = scmp.eq.s32.totalorder %s26, 0
    %p205 = por %p203, %p204
    %s207 = sadd.s32 %s206, 1
    %p210 = scmp.eq.s32.totalorder %s20, 1
    %p211 = scmp.ne.s32.totalorder %s206, %s208
    %p212 = scmp.eq.s32.totalorder %s20, 0
    %p213 = por %p211, %p212
    %p214 = scmp.ne.s32.totalorder %s206, %s208
    %p215 = scmp.eq.s32.totalorder %s25, 1
    %p216 = por %p214, %p215
    %p217 = scmp.ne.s32.totalorder %s208, %s209
    %p218 = scmp.eq.s32.totalorder %s25, 0
    %p219 = por %p217, %p218
    %p220 = scmp.ne.s32.totalorder %s208, %s209
    %p221 = scmp.eq.s32.totalorder %s26, 1
    %p222 = por %p220, %p221
    %p224 = scmp.ne.s32.totalorder %s209, %s223
    %p225 = scmp.eq.s32.totalorder %s26, 0
    %p226 = por %p224, %p225
    %s228 = sadd.s32 %s227, 1
    %p231 = scmp.eq.s32.totalorder %s20, 1
    %p232 = scmp.ne.s32.totalorder %s227, %s229
    %p233 = scmp.eq.s32.totalorder %s20, 0
    %p234 = por %p232, %p233
    %p235 = scmp.ne.s32.totalorder %s227, %s229
    %p236 = scmp.eq.s32.totalorder %s25, 1
    %p237 = por %p235, %p236
    %p238 = scmp.ne.s32.totalorder %s229, %s230
    %p239 = scmp.eq.s32.totalorder %s25, 0
    %p240 = por %p238, %p239
    %p241 = scmp.ne.s32.totalorder %s229, %s230
    %p242 = scmp.eq.s32.totalorder %s26, 1
    %p243 = por %p241, %p242
    %p245 = scmp.ne.s32.totalorder %s230, %s244
    %p246 = scmp.eq.s32.totalorder %s26, 0
    %p247 = por %p245, %p246
    %s249 = sadd.s32 %s248, 1
    %p252 = scmp.eq.s32.totalorder %s20, 1
    %p253 = scmp.ne.s32.totalorder %s248, %s250
    %p254 = scmp.eq.s32.totalorder %s20, 0
    %p255 = por %p253, %p254
    %p256 = scmp.ne.s32.totalorder %s248, %s250
    %p257 = scmp.eq.s32.totalorder %s25, 1
    %p258 = por %p256, %p257
    %p259 = scmp.ne.s32.totalorder %s250, %s251
    %p260 = scmp.eq.s32.totalorder %s25, 0
    %p261 = por %p259, %p260
    %p262 = scmp.ne.s32.totalorder %s250, %s251
    %p263 = scmp.eq.s32.totalorder %s26, 1
    %p264 = por %p262, %p263
    %p266 = scmp.ne.s32.totalorder %s251, %s265
    %p267 = scmp.eq.s32.totalorder %s26, 0
    %p268 = por %p266, %p267
    %s269 = ssub.s32 %s20, %s27
    %p270 = scmp.eq.s32.totalorder %s269, 0
    %s272 = sadd.s32 %s271, 1
    %s273 = scalar_select %p270, %s271, %s272
    %p276 = pneg %p270
    %p277 = scmp.eq.s32.totalorder %s20, 1
    %p278 = por %p276, %p277
    %p279 = scmp.ne.s32.totalorder %s271, %s274
    %p280 = scmp.eq.s32.totalorder %s20, 0
    %p281 = por %p279, %p280
    %p282 = scmp.ne.s32.totalorder %s271, %s274
    %p283 = scmp.eq.s32.totalorder %s25, 1
    %p284 = por %p282, %p283
    %p285 = scmp.ne.s32.totalorder %s274, %s275
    %p286 = scmp.eq.s32.totalorder %s25, 0
    %p287 = por %p285, %p286
    %p288 = scmp.ne.s32.totalorder %s274, %s275
    %p289 = scmp.eq.s32.totalorder %s26, 1
    %p290 = por %p288, %p289
    %p292 = scmp.ne.s32.totalorder %s275, %s291
    %p293 = scmp.eq.s32.totalorder %s26, 0
    %p294 = por %p292, %p293
    %s296 = sadd.s32 %s295, 1
    %p299 = scmp.eq.s32.totalorder %s20, 1
    %p300 = scmp.ne.s32.totalorder %s295, %s297
    %p301 = scmp.eq.s32.totalorder %s20, 0
    %p302 = por %p300, %p301
    %p303 = scmp.ne.s32.totalorder %s295, %s297
    %p304 = scmp.eq.s32.totalorder %s25, 1
    %p305 = por %p303, %p304
    %p306 = scmp.ne.s32.totalorder %s297, %s298
    %p307 = scmp.eq.s32.totalorder %s25, 0
    %p308 = por %p306, %p307
    %p309 = scmp.ne.s32.totalorder %s297, %s298
    %p310 = scmp.eq.s32.totalorder %s26, 1
    %p311 = por %p309, %p310
    %p313 = scmp.ne.s32.totalorder %s298, %s312
    %p314 = scmp.eq.s32.totalorder %s26, 0
    %p315 = por %p313, %p314
    %s317 = sadd.s32 %s316, 1
    %p320 = scmp.eq.s32.totalorder %s20, 1
    %p321 = scmp.ne.s32.totalorder %s316, %s318
    %p322 = scmp.eq.s32.totalorder %s20, 0
    %p323 = por %p321, %p322
    %p324 = scmp.ne.s32.totalorder %s316, %s318
    %p325 = scmp.eq.s32.totalorder %s25, 1
    %p326 = por %p324, %p325
    %p327 = scmp.ne.s32.totalorder %s318, %s319
    %p328 = scmp.eq.s32.totalorder %s25, 0
    %p329 = por %p327, %p328
    %p330 = scmp.ne.s32.totalorder %s318, %s319
    %p331 = scmp.eq.s32.totalorder %s26, 1
    %p332 = por %p330, %p331
    %p334 = scmp.ne.s32.totalorder %s319, %s333
    %p335 = scmp.eq.s32.totalorder %s26, 0
    %p336 = por %p334, %p335
    %s337 = ssub.s32 %s20, %s27
    %p338 = scmp.eq.s32.totalorder %s337, 0
    %s340 = sadd.s32 %s339, 1
    %s341 = scalar_select %p338, %s339, %s340
    %p344 = pneg %p338
    %p345 = scmp.eq.s32.totalorder %s20, 1
    %p346 = por %p344, %p345
    %p347 = scmp.ne.s32.totalorder %s339, %s342
    %p348 = scmp.eq.s32.totalorder %s20, 0
    %p349 = por %p347, %p348
    %p350 = scmp.ne.s32.totalorder %s339, %s342
    %p351 = scmp.eq.s32.totalorder %s25, 1
    %p352 = por %p350, %p351
    %p353 = scmp.ne.s32.totalorder %s342, %s343
    %p354 = scmp.eq.s32.totalorder %s25, 0
    %p355 = por %p353, %p354
    %p356 = scmp.ne.s32.totalorder %s342, %s343
    %p357 = scmp.eq.s32.totalorder %s26, 1
    %p358 = por %p356, %p357
    %p360 = scmp.ne.s32.totalorder %s343, %s359
    %p361 = scmp.eq.s32.totalorder %s26, 0
    %p362 = por %p360, %p361
    %p363 = scmp.le.s32.totalorder 1, %s20
    %p364 = scmp.lt.s32.totalorder %s20, 3
    %p365 = pnand %p363, %p364
    %p366 = pneg %p365
    // Predicated region
    $region9: #{block_forward.3} parent=5 // pred_check
      _
    $region10: #{block_forward.3} parent=5 // pred_check_branch
      %368 = sbr.rel (%p365) target = $region12
    $region11: #{block_forward.3} parent=5 // pred_region
      %s369 = ssub.s32 %s20, 1
      // Predicated region
      $region13: #{block_forward.3} parent=11 // pred_check
        %p370 = pneg %p67
      $region14: #{block_forward.3} parent=11 // pred_check_branch
        %372 = sbr.rel (%p370) target = $region16
      $region15: #{block_forward.3} parent=11 // pred_region
        _
      $region16: #{block_forward.3} parent=11 // pred_fallthru
        _
      // Predicated region
      $region17: #{block_forward.3} parent=11 // pred_check
        %p373 = pneg %p88
      $region18: #{block_forward.3} parent=11 // pred_check_branch
        %375 = sbr.rel (%p373) target = $region20
      $region19: #{block_forward.3} parent=11 // pred_region
        _
      $region20: #{block_forward.3} parent=11 // pred_fallthru
        _
      // Predicated region
      $region21: #{block_forward.3} parent=11 // pred_check
        %p376 = pneg %p135
      $region22: #{block_forward.3} parent=11 // pred_check_branch
        %378 = sbr.rel (%p376) target = $region24
      $region23: #{block_forward.3} parent=11 // pred_region
        _
      $region24: #{block_forward.3} parent=11 // pred_fallthru
        _
      // Predicated region
      $region25: #{block_forward.3} parent=11 // pred_check
        %p379 = pneg %p156
      $region26: #{block_forward.3} parent=11 // pred_check_branch
        %381 = sbr.rel (%p379) target = $region28
      $region27: #{block_forward.3} parent=11 // pred_region
        _
      $region28: #{block_forward.3} parent=11 // pred_fallthru
        _
      // Predicated region
      $region29: #{block_forward.3} parent=11 // pred_check
        %p382 = pneg %p177
      $region30: #{block_forward.3} parent=11 // pred_check_branch
        %384 = sbr.rel (%p382) target = $region32
      $region31: #{block_forward.3} parent=11 // pred_region
        _
      $region32: #{block_forward.3} parent=11 // pred_fallthru
        _
      // Predicated region
      $region33: #{block_forward.3} parent=11 // pred_check
        %p385 = pneg %p198
      $region34: #{block_forward.3} parent=11 // pred_check_branch
        %387 = sbr.rel (%p385) target = $region36
      $region35: #{block_forward.3} parent=11 // pred_region
        _
      $region36: #{block_forward.3} parent=11 // pred_fallthru
        _
      // Predicated region
      $region37: #{block_forward.3} parent=11 // pred_check
        %p388 = pneg %p219
      $region38: #{block_forward.3} parent=11 // pred_check_branch
        %390 = sbr.rel (%p388) target = $region40
      $region39: #{block_forward.3} parent=11 // pred_region
        _
      $region40: #{block_forward.3} parent=11 // pred_fallthru
        _
      // Predicated region
      $region41: #{block_forward.3} parent=11 // pred_check
        %p391 = pneg %p240
      $region42: #{block_forward.3} parent=11 // pred_check_branch
        %393 = sbr.rel (%p391) target = $region44
      $region43: #{block_forward.3} parent=11 // pred_region
        _
      $region44: #{block_forward.3} parent=11 // pred_fallthru
        _
      // Predicated region
      $region45: #{block_forward.3} parent=11 // pred_check
        %p394 = pneg %p261
      $region46: #{block_forward.3} parent=11 // pred_check_branch
        %396 = sbr.rel (%p394) target = $region48
      $region47: #{block_forward.3} parent=11 // pred_region
        _
      $region48: #{block_forward.3} parent=11 // pred_fallthru
        _
      // Predicated region
      $region49: #{block_forward.3} parent=11 // pred_check
        %p397 = pneg %p308
      $region50: #{block_forward.3} parent=11 // pred_check_branch
        %399 = sbr.rel (%p397) target = $region52
      $region51: #{block_forward.3} parent=11 // pred_region
        _
      $region52: #{block_forward.3} parent=11 // pred_fallthru
        _
      // Predicated region
      $region53: #{block_forward.3} parent=11 // pred_check
        %p400 = pneg %p329
      $region54: #{block_forward.3} parent=11 // pred_check_branch
        %402 = sbr.rel (%p400) target = $region56
      $region55: #{block_forward.3} parent=11 // pred_region
        _
      $region56: #{block_forward.3} parent=11 // pred_fallthru
        _
    $region12: #{block_forward.3} parent=5 // pred_fallthru
      _
    %p403 = scmp.lt.s32.totalorder %s20, 2
    // Predicated region
    $region57: #{block_forward.3} parent=5 // pred_check
      %p404 = pneg %p403
    $region58: #{block_forward.3} parent=5 // pred_check_branch
      %406 = sbr.rel (%p404) target = $region60
    $region59: #{block_forward.3} parent=5 // pred_region
      // Predicated region
      $region61: #{block_forward.3} parent=59 // pred_check
        %p407 = pneg %p40
      $region62: #{block_forward.3} parent=59 // pred_check_branch
        %409 = sbr.rel (%p407) target = $region64
      $region63: #{block_forward.3} parent=59 // pred_region
        %p410 = scmp.lt.s32.totalorder %s20, 1
        %s411 = scalar_select %p410, %s20, 1
        %s412 = smul.addr %s411, 18
        %s413 = smul.addr %s412, 4
        %s414 = scalar_lea.vmem %s0, %s413
      $region64: #{block_forward.3} parent=59 // pred_fallthru
        _
      // Predicated region
      $region65: #{block_forward.3} parent=59 // pred_check
        %p415 = pneg %p108
      $region66: #{block_forward.3} parent=59 // pred_check_branch
        %417 = sbr.rel (%p415) target = $region68
      $region67: #{block_forward.3} parent=59 // pred_region
        %p418 = scmp.lt.s32.totalorder %s20, 1
        %s419 = scalar_select %p418, %s20, 1
        %s420 = smul.addr %s419, 6
        %s421 = smul.addr %s420, 4
        %s422 = scalar_lea.vmem %s3, %s421
      $region68: #{block_forward.3} parent=59 // pred_fallthru
        _
      // Predicated region
      $region69: #{block_forward.3} parent=59 // pred_check
        %p423 = pneg %p281
      $region70: #{block_forward.3} parent=59 // pred_check_branch
        %425 = sbr.rel (%p423) target = $region72
      $region71: #{block_forward.3} parent=59 // pred_region
        %p426 = scmp.lt.s32.totalorder %s20, 1
        %s427 = scalar_select %p426, %s20, 1
        %s428 = smul.addr %s427, 3
        %s429 = smul.addr %s428, 4
        %s430 = scalar_lea.vmem %s11, %s429
      $region72: #{block_forward.3} parent=59 // pred_fallthru
        _
    $region60: #{block_forward.3} parent=5 // pred_fallthru
      _
    %p431 = scmp.le.s32.totalorder 1, %s20
    %p432 = scmp.lt.s32.totalorder %s20, 3
    %p433 = pnand %p431, %p432
    %p434 = pneg %p433
    // Predicated region
    $region73: #{block_forward.3} parent=5 // pred_check
      _
    $region74: #{block_forward.3} parent=5 // pred_check_branch
      %436 = sbr.rel (%p433) target = $region76
    $region75: #{block_forward.3} parent=5 // pred_region
      %s437 = ssub.s32 %s20, 1
      %p438 = scmp.lt.s32.totalorder %s25, 1
      %s439 = scalar_select %p438, %s25, 1
      %s440 = smul.addr %s439, 18
      %s441 = smul.addr %s440, 4
      %s442 = scalar_lea.vmem %s0, %s441
      %p443 = pneg %p46
      %p444 = pneg %p43
      %p445 = pneg %p67
      %p446 = pneg %p64
      %p447 = pneg %p88
      %p448 = pneg %p85
      %p449 = scmp.lt.s32.totalorder %s25, 1
      %s450 = scalar_select %p449, %s25, 1
      %s451 = smul.addr %s450, 6
      %s452 = smul.addr %s451, 4
      %s453 = scalar_lea.vmem %s3, %s452
      %p454 = pneg %p114
      %p455 = pneg %p111
      %p456 = pneg %p135
      %p457 = pneg %p132
      %p458 = pneg %p156
      %p459 = pneg %p153
      %p460 = pneg %p177
      %p461 = pneg %p174
      %p462 = pneg %p198
      %p463 = pneg %p195
      %p464 = pneg %p219
      %p465 = pneg %p216
      %p466 = pneg %p240
      %p467 = pneg %p237
      %p468 = pneg %p261
      %p469 = pneg %p258
      %p470 = scmp.lt.s32.totalorder %s25, 1
      %s471 = scalar_select %p470, %s25, 1
      %s472 = smul.addr %s471, 3
      %s473 = smul.addr %s472, 4
      %s474 = scalar_lea.vmem %s11, %s473
      %p475 = pneg %p287
      %p476 = pneg %p284
      %p477 = pneg %p308
      %p478 = pneg %p305
      %p479 = pneg %p329
      %p480 = pneg %p326
      %p481 = pneg %p355
      %p482 = pneg %p352
      %p483 = scmp.lt.s32.totalorder %s25, 1
      %s484 = scalar_select %p483, %s25, 1
      %s485 = smul.addr %s484, 3
      %s486 = smul.addr %s485, 4
      %s487 = scalar_lea.vmem %s14, %s486
      %p488 = scmp.lt.s32.totalorder %s25, 1
      %s489 = scalar_select %p488, %s25, 1
      %s490 = smul.addr %s489, 18
      %s491 = smul.addr %s490, 4
      %s492 = scalar_lea.vmem %s0, %s491
      %p493 = scmp.lt.s32.totalorder %s25, 1
      %s494 = scalar_select %p493, %s25, 1
      %s495 = smul.addr %s494, 6
      %s496 = smul.addr %s495, 4
      %s497 = scalar_lea.vmem %s3, %s496
      %p498 = scmp.lt.s32.totalorder %s25, 1
      %s499 = scalar_select %p498, %s25, 1
      %s500 = smul.addr %s499, 3
      %s501 = smul.addr %s500, 4
      %s502 = scalar_lea.vmem %s11, %s501
      %p503 = scmp.lt.s32.totalorder %s25, 1
      %s504 = scalar_select %p503, %s25, 1
      %s505 = smul.addr %s504, 3
      %s506 = smul.addr %s505, 4
      %s507 = scalar_lea.vmem %s14, %s506
      %v509 = vld [vmem:[%s492] sm:$0xf]
      %v510 = vld [vmem:[%s492 + $0x4] sm:$0xf]
      %v511 = vld [vmem:[%s492 + $0x8] sm:$0xf]
      %v512 = vunpack.c.l.bf16 %v509
      %v513 = vunpack.c.l.bf16 %v510
      %v514 = vunpack.c.l.bf16 %v511
      %v515 = vld [vmem:[%s1] sm:$0x1]
      %v516 = vperm.slane %v515, 0
      %v517 = vmul.f32 %v512, %v516
      %v518 = vmul.f32 %v513, %v516
      %v519 = vmul.f32 %v514, %v516
      %v520 = vadd.f32 %v517, 0.0
      %v521 = vadd.f32 %v518, 0.0
      %v522 = vadd.f32 %v519, 0.0
      %v523 = vld [vmem:[%s492 + $0x10] sm:$0xc]
      %v524 = vld [vmem:[%s492 + $0x14] sm:$0xf]
      %v525 = vld [vmem:[%s492 + $0x18] sm:$0xf]
      %v526 = vld [vmem:[%s492 + $0x1c] sm:$0x3]
      %v527 = vunpack.c.l.bf16 %v523
      %v528 = vunpack.c.l.bf16 %v524
      %v529 = vunpack.c.l.bf16 %v525
      %v530 = vunpack.c.l.bf16 %v526
      %v531 = vld [vmem:[%s1 + $0x1] sm:$0x1]
      %v532 = vperm.slane %v531, 0
      %v533 = vmul.f32 %v527, %v532
      %v534 = vmul.f32 %v528, %v532
      %v535 = vmul.f32 %v529, %v532
      %v536 = vmul.f32 %v530, %v532
      %vm541 = vcmask 1043456
      %v542 = vrot.slane %v533, 4
      %v543 = vrot.slane %v534, 4
      %v544 = vsel %vm541, %v542, %v543
      %v545 = vrot.slane %v535, 4
      %v546 = vsel %vm541, %v543, %v545
      %v547 = vrot.slane %v536, 4
      %v548 = vsel %vm541, %v545, %v547
      %v552 = vadd.f32 %v520, %v544
      %v553 = vadd.f32 %v521, %v546
      %v554 = vadd.f32 %v522, %v548
      %v555 = vld [vmem:[%s492 + $0xc] sm:$0x1]
      %v556 = vunpack.c.l.bf16 %v555
      %v557 = vld [vmem:[%s1 + $0x2] sm:$0x1]
      %v558 = vperm.slane %v557, 0
      %v559 = vmul.f32 %v512, %v558
      %v560 = vmul.f32 %v513, %v558
      %v561 = vmul.f32 %v514, %v558
      %v562 = vmul.f32 %v556, %v558
      %vm567 = vcmask 1046528
      %v568 = vrot.slane %v559, 1
      %v569 = vrot.slane %v560, 1
      %v570 = vsel %vm567, %v568, %v569
      %v571 = vrot.slane %v561, 1
      %v572 = vsel %vm567, %v569, %v571
      %v573 = vrot.slane %v562, 1
      %v574 = vsel %vm567, %v571, %v573
      %v578 = vadd.f32 %v552, %v570
      %v579 = vadd.f32 %v553, %v572
      %v580 = vadd.f32 %v554, %v574
      %v581 = vld [vmem:[%s492 + $0x24] sm:$0xf]
      %v582 = vld [vmem:[%s492 + $0x28] sm:$0xf]
      %v583 = vld [vmem:[%s492 + $0x2c] sm:$0xf]
      %v584 = vunpack.c.l.bf16 %v581
      %v585 = vunpack.c.l.bf16 %v582
      %v586 = vunpack.c.l.bf16 %v583
      %v587 = vld [vmem:[%s1 + $0x3] sm:$0x1]
      %v588 = vperm.slane %v587, 0
      %v589 = vmul.f32 %v584, %v588
      %v590 = vmul.f32 %v585, %v588
      %v591 = vmul.f32 %v586, %v588
      %v592 = vadd.f32 %v578, %v589
      %v593 = vadd.f32 %v579, %v590
      %v594 = vadd.f32 %v580, %v591
      %v595 = vld [vmem:[%s492 + $0x34] sm:$0xc]
      %v596 = vld [vmem:[%s492 + $0x38] sm:$0xf]
      %v597 = vld [vmem:[%s492 + $0x3c] sm:$0xf]
      %v598 = vld [vmem:[%s492 + $0x40] sm:$0x3]
      %v599 = vunpack.c.l.bf16 %v595
      %v600 = vunpack.c.l.bf16 %v596
      %v601 = vunpack.c.l.bf16 %v597
      %v602 = vunpack.c.l.bf16 %v598
      %v603 = vld [vmem:[%s1 + $0x4] sm:$0x1]
      %v604 = vperm.slane %v603, 0
      %v605 = vmul.f32 %v599, %v604
      %v606 = vmul.f32 %v600, %v604
      %v607 = vmul.f32 %v601, %v604
      %v608 = vmul.f32 %v602, %v604
      %v613 = vrot.slane %v605, 4
      %v614 = vrot.slane %v606, 4
      %v615 = vsel %vm541, %v613, %v614
      %v616 = vrot.slane %v607, 4
      %v617 = vsel %vm541, %v614, %v616
      %v618 = vrot.slane %v608, 4
      %v619 = vsel %vm541, %v616, %v618
      %v623 = vadd.f32 %v592, %v615
      %v624 = vadd.f32 %v593, %v617
      %v625 = vadd.f32 %v594, %v619
      %v626 = vld [vmem:[%s492 + $0x30] sm:$0x1]
      %v627 = vunpack.c.l.bf16 %v626
      %v628 = vld [vmem:[%s1 + $0x5] sm:$0x1]
      %v629 = vperm.slane %v628, 0
      %v630 = vmul.f32 %v584, %v629
      %v631 = vmul.f32 %v585, %v629
      %v632 = vmul.f32 %v586, %v629
      %v633 = vmul.f32 %v627, %v629
      %v638 = vrot.slane %v630, 1
      %v639 = vrot.slane %v631, 1
      %v640 = vsel %vm567, %v638, %v639
      %v641 = vrot.slane %v632, 1
      %v642 = vsel %vm567, %v639, %v641
      %v643 = vrot.slane %v633, 1
      %v644 = vsel %vm567, %v641, %v643
      %v648 = vadd.f32 %v623, %v640
      %v649 = vadd.f32 %v624, %v642
      %v650 = vadd.f32 %v625, %v644
      %v651 = vld [vmem:[%s492] sm:$0x8]
      %v652 = vld [vmem:[%s492 + $0xc] sm:$0x7]
      %v653 = vunpack.c.l.bf16 %v651
      %v654 = vunpack.c.l.bf16 %v652
      %v655 = vld [vmem:[%s1 + $0x6] sm:$0x1]
      %v656 = vperm.slane %v655, 0
      %v657 = vmul.f32 %v653, %v656
      %v658 = vmul.f32 %v513, %v656
      %v659 = vmul.f32 %v514, %v656
      %v660 = vmul.f32 %v654, %v656
      %vm665 = vcmask 1041408
      %v666 = vrot.slane %v657, 6
      %v667 = vrot.slane %v658, 6
      %v668 = vsel %vm665, %v666, %v667
      %v669 = vrot.slane %v659, 6
      %v670 = vsel %vm665, %v667, %v669
      %v671 = vrot.slane %v660, 6
      %v672 = vsel %vm665, %v669, %v671
      %v676 = vadd.f32 %v648, %v668
      %v677 = vadd.f32 %v649, %v670
      %v678 = vadd.f32 %v650, %v672
      %v679 = vld [vmem:[%s492 + $0x14] sm:$0xe]
      %v680 = vld [vmem:[%s492 + $0x1c] sm:$0xf]
      %v681 = vld [vmem:[%s492 + $0x20] sm:$0x1]
      %v682 = vunpack.c.l.bf16 %v679
      %v683 = vunpack.c.l.bf16 %v680
      %v684 = vunpack.c.l.bf16 %v681
      %v685 = vld [vmem:[%s1 + $0x7] sm:$0x1]
      %v686 = vperm.slane %v685, 0
      %v687 = vmul.f32 %v682, %v686
      %v688 = vmul.f32 %v529, %v686
      %v689 = vmul.f32 %v683, %v686
      %v690 = vmul.f32 %v684, %v686
      %vm695 = vcmask 1045504
      %v696 = vrot.slane %v687, 2
      %v697 = vrot.slane %v688, 2
      %v698 = vsel %vm695, %v696, %v697
      %v699 = vrot.slane %v689, 2
      %v700 = vsel %vm695, %v697, %v699
      %v701 = vrot.slane %v690, 2
      %v702 = vsel %vm695, %v699, %v701
      %v706 = vadd.f32 %v676, %v698
      %v707 = vadd.f32 %v677, %v700
      %v708 = vadd.f32 %v678, %v702
      %v709 = vld [vmem:[%s492 + $0xc] sm:$0xf]
      %v710 = vunpack.c.l.bf16 %v709
      %v711 = vld [vmem:[%s1 + $0x8] sm:$0x1]
      %v712 = vperm.slane %v711, 0
      %v713 = vmul.f32 %v653, %v712
      %v714 = vmul.f32 %v513, %v712
      %v715 = vmul.f32 %v514, %v712
      %v716 = vmul.f32 %v710, %v712
      %vm721 = vcmask 1040384
      %v722 = vrot.slane %v713, 7
      %v723 = vrot.slane %v714, 7
      %v724 = vsel %vm721, %v722, %v723
      %v725 = vrot.slane %v715, 7
      %v726 = vsel %vm721, %v723, %v725
      %v727 = vrot.slane %v716, 7
      %v728 = vsel %vm721, %v725, %v727
      %v732 = vadd.f32 %v706, %v724
      %v733 = vadd.f32 %v707, %v726
      %v734 = vadd.f32 %v708, %v728
      %v735 = vld [vmem:[%s2] sm:$0x1]
      %v737 = vperm.slane %v735, 0
      %v739 = vadd.f32 %v732, %v737
      %v740 = vadd.f32 %v733, %v737
      %v741 = vadd.f32 %v734, %v737
      %v742 = vmax.f32 %v739, 0.0
      %v743 = vmax.f32 %v740, 0.0
      %v744 = vmax.f32 %v741, 0.0
      %vm745 = vcmask 261120
      %746 = vst.msk [vmem:[#allocation2] sm:$0xff] %vm745, %v742
      %747 = vst.msk [vmem:[#allocation2 + $0x8] sm:$0xff] %vm745, %v743
      %748 = vst.msk [vmem:[#allocation2 + $0x10] sm:$0xff] %vm745, %v744
      %v749 = vld [vmem:[%s497] sm:$0xf]
      %v750 = vld [vmem:[%s497 + $0x4] sm:$0xf]
      %v751 = vld [vmem:[%s497 + $0x8] sm:$0xf]
      %v752 = vunpack.c.l.bf16 %v749
      %v753 = vunpack.c.l.bf16 %v750
      %v754 = vunpack.c.l.bf16 %v751
      %v755 = vld [vmem:[%s4] sm:$0x1]
      %v756 = vperm.slane %v755, 0
      %v757 = vmul.f32 %v752, %v756
      %v758 = vmul.f32 %v753, %v756
      %v759 = vmul.f32 %v754, %v756
      %v760 = vadd.f32 %v757, 0.0
      %v761 = vadd.f32 %v758, 0.0
      %v762 = vadd.f32 %v759, 0.0
      %v763 = vld [vmem:[%s497 + $0xc] sm:$0x1]
      %v764 = vunpack.c.l.bf16 %v763
      %v765 = vld [vmem:[%s4 + $0x1] sm:$0x1]
      %v766 = vperm.slane %v765, 0
      %v767 = vmul.f32 %v752, %v766
      %v768 = vmul.f32 %v753, %v766
      %v769 = vmul.f32 %v754, %v766
      %v770 = vmul.f32 %v764, %v766
      %v775 = vrot.slane %v767, 1
      %v776 = vrot.slane %v768, 1
      %v777 = vsel %vm567, %v775, %v776
      %v778 = vrot.slane %v769, 1
      %v779 = vsel %vm567, %v776, %v778
      %v780 = vrot.slane %v770, 1
      %v781 = vsel %vm567, %v778, %v780
      %v785 = vadd.f32 %v760, %v777
      %v786 = vadd.f32 %v761, %v779
      %v787 = vadd.f32 %v762, %v781
      %v788 = vld [vmem:[%s497] sm:$0xe]
      %v789 = vunpack.c.l.bf16 %v788
      %v790 = vld [vmem:[%s4 + $0x2] sm:$0x1]
      %v791 = vperm.slane %v790, 0
      %v792 = vmul.f32 %v789, %v791
      %v793 = vmul.f32 %v753, %v791
      %v794 = vmul.f32 %v754, %v791
      %v795 = vmul.f32 %v764, %v791
      %v800 = vrot.slane %v792, 2
      %v801 = vrot.slane %v793, 2
      %v802 = vsel %vm695, %v800, %v801
      %v803 = vrot.slane %v794, 2
      %v804 = vsel %vm695, %v801, %v803
      %v805 = vrot.slane %v795, 2
      %v806 = vsel %vm695, %v803, %v805
      %v810 = vadd.f32 %v785, %v802
      %v811 = vadd.f32 %v786, %v804
      %v812 = vadd.f32 %v787, %v806
      %v813 = vld [vmem:[%s497] sm:$0x8]
      %v814 = vld [vmem:[%s497 + $0xc] sm:$0x7]
      %v815 = vunpack.c.l.bf16 %v813
      %v816 = vunpack.c.l.bf16 %v814
      %v817 = vld [vmem:[%s4 + $0x3] sm:$0x1]
      %v818 = vperm.slane %v817, 0
      %v819 = vmul.f32 %v815, %v818
      %v820 = vmul.f32 %v753, %v818
      %v821 = vmul.f32 %v754, %v818
      %v822 = vmul.f32 %v816, %v818
      %v827 = vrot.slane %v819, 6
      %v828 = vrot.slane %v820, 6
      %v829 = vsel %vm665, %v827, %v828
      %v830 = vrot.slane %v821, 6
      %v831 = vsel %vm665, %v828, %v830
      %v832 = vrot.slane %v822, 6
      %v833 = vsel %vm665, %v830, %v832
      %v837 = vadd.f32 %v810, %v829
      %v838 = vadd.f32 %v811, %v831
      %v839 = vadd.f32 %v812, %v833
      %v840 = vld [vmem:[%s497 + $0xc] sm:$0xf]
      %v841 = vunpack.c.l.bf16 %v840
      %v842 = vld [vmem:[%s4 + $0x4] sm:$0x1]
      %v843 = vperm.slane %v842, 0
      %v844 = vmul.f32 %v815, %v843
      %v845 = vmul.f32 %v753, %v843
      %v846 = vmul.f32 %v754, %v843
      %v847 = vmul.f32 %v841, %v843
      %v852 = vrot.slane %v844, 7
      %v853 = vrot.slane %v845, 7
      %v854 = vsel %vm721, %v852, %v853
      %v855 = vrot.slane %v846, 7
      %v856 = vsel %vm721, %v853, %v855
      %v857 = vrot.slane %v847, 7
      %v858 = vsel %vm721, %v855, %v857
      %v862 = vadd.f32 %v837, %v854
      %v863 = vadd.f32 %v838, %v856
      %v864 = vadd.f32 %v839, %v858
      %v865 = vld [vmem:[%s4 + $0x5] sm:$0x1]
      %v866 = vperm.slane %v865, 0
      %v867 = vmul.f32 %v753, %v866
      %v868 = vmul.f32 %v754, %v866
      %v869 = vmul.f32 %v841, %v866
      %v870 = vadd.f32 %v862, %v867
      %v871 = vadd.f32 %v863, %v868
      %v872 = vadd.f32 %v864, %v869
      %v873 = vld [vmem:[%s497 + $0x4] sm:$0xc]
      %v874 = vld [vmem:[%s497 + $0x10] sm:$0x3]
      %v875 = vunpack.c.l.bf16 %v873
      %v876 = vunpack.c.l.bf16 %v874
      %v877 = vld [vmem:[%s4 + $0x6] sm:$0x1]
      %v878 = vperm.slane %v877, 0
      %v879 = vmul.f32 %v875, %v878
      %v880 = vmul.f32 %v754, %v878
      %v881 = vmul.f32 %v841, %v878
      %v882 = vmul.f32 %v876, %v878
      %v887 = vrot.slane %v879, 4
      %v888 = vrot.slane %v880, 4
      %v889 = vsel %vm541, %v887, %v888
      %v890 = vrot.slane %v881, 4
      %v891 = vsel %vm541, %v888, %v890
      %v892 = vrot.slane %v882, 4
      %v893 = vsel %vm541, %v890, %v892
      %v897 = vadd.f32 %v870, %v889
      %v898 = vadd.f32 %v871, %v891
      %v899 = vadd.f32 %v872, %v893
      %v900 = vld [vmem:[%s497 + $0x10] sm:$0x7]
      %v901 = vunpack.c.l.bf16 %v900
      %v902 = vld [vmem:[%s4 + $0x7] sm:$0x1]
      %v903 = vperm.slane %v902, 0
      %v904 = vmul.f32 %v875, %v903
      %v905 = vmul.f32 %v754, %v903
      %v906 = vmul.f32 %v841, %v903
      %v907 = vmul.f32 %v901, %v903
      %vm912 = vcmask 1042432
      %v913 = vrot.slane %v904, 5
      %v914 = vrot.slane %v905, 5
      %v915 = vsel %vm912, %v913, %v914
      %v916 = vrot.slane %v906, 5
      %v917 = vsel %vm912, %v914, %v916
      %v918 = vrot.slane %v907, 5
      %v919 = vsel %vm912, %v916, %v918
      %v923 = vadd.f32 %v897, %v915
      %v924 = vadd.f32 %v898, %v917
      %v925 = vadd.f32 %v899, %v919
      %v926 = vld [vmem:[%s497 + $0x4] sm:$0x8]
      %v927 = vunpack.c.l.bf16 %v926
      %v928 = vld [vmem:[%s4 + $0x8] sm:$0x1]
      %v929 = vperm.slane %v928, 0
      %v930 = vmul.f32 %v927, %v929
      %v931 = vmul.f32 %v754, %v929
      %v932 = vmul.f32 %v841, %v929
      %v933 = vmul.f32 %v901, %v929
      %v938 = vrot.slane %v930, 6
      %v939 = vrot.slane %v931, 6
      %v940 = vsel %vm665, %v938, %v939
      %v941 = vrot.slane %v932, 6
      %v942 = vsel %vm665, %v939, %v941
      %v943 = vrot.slane %v933, 6
      %v944 = vsel %vm665, %v941, %v943
      %v948 = vadd.f32 %v923, %v940
      %v949 = vadd.f32 %v924, %v942
      %v950 = vadd.f32 %v925, %v944
      %v951 = vld [vmem:[%s5] sm:$0xff]
      %v952 = vld [vmem:[%s5 + $0x8] sm:$0xff]
      %v953 = vld [vmem:[%s5 + $0x10] sm:$0xff]
      %v954 = vld [vmem:[%s5 + $0x18] sm:$0xff]
      %v955 = vld [vmem:[%s5 + $0x20] sm:$0xff]
      %v956 = vld [vmem:[%s5 + $0x28] sm:$0xff]
      %v957 = vld [vmem:[%s5 + $0x30] sm:$0xff]
      %v958 = vld [vmem:[%s5 + $0x38] sm:$0xff]
      %v959 = vld [vmem:[%s5 + $0x40] sm:$0xff]
      %v960 = vld [vmem:[%s5 + $0x48] sm:$0xff]
      %v961 = vld [vmem:[%s5 + $0x50] sm:$0xff]
      %v962 = vld [vmem:[%s5 + $0x58] sm:$0xff]
      %v963 = vld [vmem:[%s5 + $0x60] sm:$0xff]
      %v964 = vld [vmem:[%s5 + $0x68] sm:$0xff]
      %v965 = vld [vmem:[%s5 + $0x70] sm:$0xff]
      %v966 = vld [vmem:[%s5 + $0x78] sm:$0xff]
      %v967 = vld [vmem:[%s6] sm:$0x1]
      %v969 = vperm.slane %v967, 0
      %971 = vmatpush.msra.mxu0 %v966
      %972 = vmatpush.msra.mxu0 %v965
      %973 = vmatpush.msra.mxu0 %v964
      %974 = vmatpush.msra.mxu0 %v963
      %975 = vmatpush.msra.mxu0 %v962
      %976 = vmatpush.msra.mxu0 %v961
      %977 = vmatpush.msra.mxu0 %v960
      %978 = vmatpush.msra.mxu0 %v959
      %979 = vmatpush.msra.mxu0 %v958
      %980 = vmatpush.msra.mxu0 %v957
      %981 = vmatpush.msra.mxu0 %v956
      %982 = vmatpush.msra.mxu0 %v955
      %983 = vmatpush.msra.mxu0 %v954
      %984 = vmatpush.msra.mxu0 %v953
      %985 = vmatpush.msra.mxu0 %v952
      %986 = vmatpush.msra.mxu0 %v951
      %987 = vmatmul.f32.gmra.mxu0 %v948
      %v988 = vpop.f32.mrf.mxu0
      %v989 = vadd.f32 %v969, %v988
      %990 = vmatmul.f32.gmra.mxu0 %v949
      %v991 = vpop.f32.mrf.mxu0
      %v992 = vadd.f32 %v969, %v991
      %993 = vmatmul.f32.gmra.mxu0 %v950
      %v994 = vpop.f32.mrf.mxu0
      %v995 = vadd.f32 %v969, %v994
      %996 = vdwg.mxu0
      %v997 = vmax.f32 %v989, 0.0
      %v998 = vmax.f32 %v992, 0.0
      %v999 = vmax.f32 %v995, 0.0
      %v1000 = vpack.c.bf16 %v998, %v997
      %v1001 = vpack.c.bf16 %v999, %v999
      %v1002 = vld [vmem:[%s7] sm:$0xf]
      %v1003 = vld [vmem:[%s7 + $0x4] sm:$0xf]
      %v1004 = vld [vmem:[%s7 + $0x8] sm:$0xf]
      %v1005 = vld [vmem:[%s7 + $0xc] sm:$0xf]
      %v1006 = vld [vmem:[%s8] sm:$0x1]
      %v1008 = vperm.slane %v1006, 0
      %v1014 = vunpack.c.l.b16 %v1002
      %v1015 = vunpack.c.l.b16 %v1003
      %v1016 = vunpack.c.l.b16 %v1004
      %v1017 = vunpack.c.l.b16 %v1005
      %v1018 = vpack.c.b16 %v1015, %v1014
      %v1019 = vpack.c.b16 %v1017, %v1016
      %v1023 = vsel %vm745, %v1000, 0
      %v1026 = vsel %vm745, %v1001, 0
      %1028 = vmatpush.bf16.msra.mxu0 0
      %1029 = vmatpush.bf16.msra.mxu0 0
      %1030 = vmatpush.bf16.msra.mxu0 0
      %1031 = vmatpush.bf16.msra.mxu0 0
      %1032 = vmatpush.bf16.msra.mxu0 0
      %1033 = vmatpush.bf16.msra.mxu0 0
      %1034 = vmatpush.bf16.msra.mxu0 %v1019
      %1035 = vmatpush.bf16.msra.mxu0 %v1018
      %1036 = vmatmul.bf16.gmra.mxu0 %v1023
      %v1037 = vpop.f32.mrf.mxu0
      %v1038 = vadd.f32 %v1008, %v1037
      %v1039 = vpop.f32.mrf.mxu0
      %v1040 = vadd.f32 %v1008, %v1039
      %1041 = vmatmul.bf16.gmra.mxu0 %v1026
      %v1042 = vpop.f32.mrf.mxu0
      %v1043 = vadd.f32 %v1008, %v1042
      %v1044 = vpop.f32.mrf.mxu0
      %1045 = vdwg.mxu0
      %v1046 = vmax.f32 %v1038, 0.0
      %v1047 = vmax.f32 %v1040, 0.0
      %v1048 = vmax.f32 %v1043, 0.0
      %v1049 = vld [vmem:[#allocation2] sm:$0xff]
      %v1050 = vld [vmem:[#allocation2 + $0x8] sm:$0xff]
      %v1051 = vld [vmem:[#allocation2 + $0x10] sm:$0xff]
      %v1052 = vadd.f32 %v1049, %v1046
      %v1053 = vadd.f32 %v1050, %v1047
      %v1054 = vadd.f32 %v1051, %v1048
      %1055 = vst.msk [vmem:[#allocation2] sm:$0xff] %vm745, %v1052
      %1056 = vst.msk [vmem:[#allocation2 + $0x8] sm:$0xff] %vm745, %v1053
      %1057 = vst.msk [vmem:[#allocation2 + $0x10] sm:$0xff] %vm745, %v1054
      %v1058 = vld [vmem:[#allocation2] sm:$0xff]
      %v1059 = vld [vmem:[#allocation2 + $0x8] sm:$0xff]
      %v1060 = vld [vmem:[#allocation2 + $0x10] sm:$0xff]
      %v1061 = vpack.c.bf16 %v1059, %v1058
      %v1062 = vpack.c.bf16 %v1060, %v1060
      %v1063 = vld [vmem:[%s9] sm:$0xf]
      %v1064 = vld [vmem:[%s9 + $0x4] sm:$0xf]
      %v1065 = vld [vmem:[%s9 + $0x8] sm:$0xf]
      %v1066 = vld [vmem:[%s9 + $0xc] sm:$0xf]
      %v1067 = vld [vmem:[%s10] sm:$0x1]
      %v1069 = vperm.slane %v1067, 0
      %v1075 = vunpack.c.l.b16 %v1063
      %v1076 = vunpack.c.l.b16 %v1064
      %v1077 = vunpack.c.l.b16 %v1065
      %v1078 = vunpack.c.l.b16 %v1066
      %v1079 = vpack.c.b16 %v1076, %v1075
      %v1080 = vpack.c.b16 %v1078, %v1077
      %v1084 = vsel %vm745, %v1061, 0
      %v1087 = vsel %vm745, %v1062, 0
      %1089 = vmatpush.bf16.msra.mxu0 0
      %1090 = vmatpush.bf16.msra.mxu0 0
      %1091 = vmatpush.bf16.msra.mxu0 0
      %1092 = vmatpush.bf16.msra.mxu0 0
      %1093 = vmatpush.bf16.msra.mxu0 0
      %1094 = vmatpush.bf16.msra.mxu0 0
      %1095 = vmatpush.bf16.msra.mxu0 %v1080
      %1096 = vmatpush.bf16.msra.mxu0 %v1079
      %1097 = vmatmul.bf16.gmra.mxu0 %v1084
      %v1098 = vpop.f32.mrf.mxu0
      %v1099 = vadd.f32 %v1069, %v1098
      %v1100 = vpop.f32.mrf.mxu0
      %v1101 = vadd.f32 %v1069, %v1100
      %1102 = vmatmul.bf16.gmra.mxu0 %v1087
      %v1103 = vpop.f32.mrf.mxu0
      %v1104 = vadd.f32 %v1069, %v1103
      %v1105 = vpop.f32.mrf.mxu0
      %1106 = vdwg.mxu0
      %v1107 = vld [vmem:[%s502] sm:$0xf]
      %v1108 = vld [vmem:[%s502 + $0x4] sm:$0xf]
      %v1109 = vld [vmem:[%s502 + $0x8] sm:$0xf]
      %v1110 = vld [vmem:[%s12] sm:$0xf]
      %v1111 = vld [vmem:[%s12 + $0x4] sm:$0xf]
      %v1112 = vld [vmem:[%s12 + $0x8] sm:$0xf]
      %v1113 = vld [vmem:[%s12 + $0xc] sm:$0xf]
      %v1114 = vld [vmem:[%s12 + $0x10] sm:$0xf]
      %v1115 = vld [vmem:[%s12 + $0x14] sm:$0xf]
      %v1116 = vld [vmem:[%s12 + $0x18] sm:$0xf]
      %v1117 = vld [vmem:[%s12 + $0x1c] sm:$0xf]
      %v1118 = vld [vmem:[%s13] sm:$0x1]
      %v1120 = vperm.slane %v1118, 0
      %v1125 = vunpack.c.l.b16 %v1107
      %v1126 = vunpack.c.l.b16 %v1108
      %v1127 = vunpack.c.l.b16 %v1109
      %v1128 = vpack.c.b16 %v1126, %v1125
      %v1129 = vpack.c.b16 %v1127, %v1127
      %v1138 = vunpack.c.l.b16 %v1110
      %v1139 = vunpack.c.l.b16 %v1111
      %v1140 = vunpack.c.l.b16 %v1112
      %v1141 = vunpack.c.l.b16 %v1113
      %v1142 = vunpack.c.l.b16 %v1114
      %v1143 = vunpack.c.l.b16 %v1115
      %v1144 = vunpack.c.l.b16 %v1116
      %v1145 = vunpack.c.l.b16 %v1117
      %v1146 = vpack.c.b16 %v1139, %v1138
      %v1147 = vpack.c.b16 %v1141, %v1140
      %v1148 = vpack.c.b16 %v1143, %v1142
      %v1149 = vpack.c.b16 %v1145, %v1144
      %vm1154 = vcmask 523264
      %v1156 = vsel %vm1154, %v1128, 0
      %v1159 = vsel %vm1154, %v1129, 0
      %1161 = vmatpush.bf16.msra.mxu0 0
      %1162 = vmatpush.bf16.msra.mxu0 0
      %1163 = vmatpush.bf16.msra.mxu0 0
      %1164 = vmatpush.bf16.msra.mxu0 0
      %1165 = vmatpush.bf16.msra.mxu0 %v1149
      %1166 = vmatpush.bf16.msra.mxu0 %v1148
      %1167 = vmatpush.bf16.msra.mxu0 %v1147
      %1168 = vmatpush.bf16.msra.mxu0 %v1146
      %1169 = vmatmul.bf16.gmra.mxu0 %v1156
      %v1170 = vpop.f32.mrf.mxu0
      %v1171 = vadd.f32 %v1120, %v1170
      %v1172 = vpop.f32.mrf.mxu0
      %v1173 = vadd.f32 %v1120, %v1172
      %1174 = vmatmul.bf16.gmra.mxu0 %v1159
      %v1175 = vpop.f32.mrf.mxu0
      %v1176 = vadd.f32 %v1120, %v1175
      %v1177 = vpop.f32.mrf.mxu0
      %1178 = vdwg.mxu0
      %v1179 = vadd.f32 %v1099, %v1171
      %v1180 = vadd.f32 %v1101, %v1173
      %v1181 = vadd.f32 %v1104, %v1176
      %v1182 = vmax.f32 %v1179, 0.0
      %v1183 = vmax.f32 %v1180, 0.0
      %v1184 = vmax.f32 %v1181, 0.0
      %v1185 = vpack.c.bf16 %v1182, %v1182
      %v1186 = vpack.c.bf16 %v1183, %v1183
      %v1187 = vpack.c.bf16 %v1184, %v1184
      %vm1188 = vcmask 519168
      %1189 = vst.msk [vmem:[%s507] sm:$0xf] %vm1188, %v1185
      %1190 = vst.msk [vmem:[%s507 + $0x4] sm:$0xf] %vm1188, %v1186
      %1191 = vst.msk [vmem:[%s507 + $0x8] sm:$0xf] %vm1188, %v1187
      %p1192 = scmp.lt.s32.totalorder %s25, 1
      %s1193 = scalar_select %p1192, %s25, 1
      %s1194 = smul.addr %s1193, 3
      %s1195 = smul.addr %s1194, 4
      %s1196 = scalar_lea.vmem %s14, %s1195
      // Predicated region
      $region77: #{block_forward.3} parent=75 // pred_check
        %p1197 = pneg %p352
      $region78: #{block_forward.3} parent=75 // pred_check_branch
        %1199 = sbr.rel (%p1197) target = $region80
      $region79: #{block_forward.3} parent=75 // pred_region
        _
      $region80: #{block_forward.3} parent=75 // pred_fallthru
        _
    $region76: #{block_forward.3} parent=5 // pred_fallthru
      _
    %p1200 = scmp.le.s32.totalorder 2, %s20
    // Predicated region
    $region81: #{block_forward.3} parent=5 // pred_check
      %p1201 = pneg %p1200
    $region82: #{block_forward.3} parent=5 // pred_check_branch
      %1203 = sbr.rel (%p1201) target = $region84
    $region83: #{block_forward.3} parent=5 // pred_region
      %s1204 = ssub.s32 %s20, 2
      // Predicated region
      $region85: #{block_forward.3} parent=83 // pred_check
        %p1205 = pneg %p358
      $region86: #{block_forward.3} parent=83 // pred_check_branch
        %1207 = sbr.rel (%p1205) target = $region88
      $region87: #{block_forward.3} parent=83 // pred_region
        %p1208 = scmp.lt.s32.totalorder %s26, 1
        %s1209 = scalar_select %p1208, %s26, 1
        %s1210 = smul.addr %s1209, 3
        %s1211 = smul.addr %s1210, 4
        %s1212 = scalar_lea.vmem %s14, %s1211
      $region88: #{block_forward.3} parent=83 // pred_fallthru
        _
    $region84: #{block_forward.3} parent=5 // pred_fallthru
      _
  $region6: #{block_forward.3} parent=0 // loop_footer
    %s24 = sadd.s32 1, %s20
  $region7: #{block_forward.3} parent=0 // loop_footer_branch
    %19 = sbr.rel target = $region3
  $region8: #{block_forward.3} parent=0 // loop_exit
    _

</llo_original>
